<compile_context>
chip_gen: v7x
topology: tpu7x:2x2x1
jax: 0.10.0
libtpu: 0.0.40
codegen_flags: <defaults>
</compile_context>

<pallas_src>
import functools

import jax
import jax.numpy as jnp
from jax.experimental import pallas as pl
from jax.experimental.pallas import tpu as pltpu


def _round_up(x, m):
    return ((x + m - 1) // m) * m


# ----------------------------------------------------------------------------
# Fused encoder + decoder kernel
#   grid = (num_batch_blocks, num_N1_tiles); encoder only at tile j == 0.
#   bblk, n2_valid are Python statics bound via functools.partial.
# ----------------------------------------------------------------------------
def _onet_kernel(bblk, n2_valid,
                 p_ref, x_ref,
                 enc_w1a_ref, enc_w2t_ref, enc_b2_ref, enc_wv_ref,
                 dec_wpa_ref, dec_wct_ref, dec_wht_ref, dec_bh_ref,
                 dec_wo_ref, dec_bo_ref,
                 logits_ref, vox_ref,
                 c_ref):
    j = pl.program_id(1)
    n2p = x_ref.shape[-1]                       # padded point count (lane multiple)

    # ---- Encoder: pointwise MLP + masked max-pool, once per batch block ------
    @pl.when(j == 0)
    def _encode():
        if n2p != n2_valid:                     # static check: padded lanes present
            lane = jax.lax.broadcasted_iota(jnp.int32, (1, n2p), 1)
            valid = lane < n2_valid
            neg_big = jnp.finfo(jnp.float32).min
        g_cols = []
        for b in range(bblk):                   # static unroll over batch elements
            x_b = x_ref[b]                                              # (4, N2p)
            h = jnp.dot(enc_w1a_ref[...], x_b,
                        preferred_element_type=jnp.float32)             # (H, N2p)
            h = jnp.maximum(h, 0.0)
            h = jnp.dot(enc_w2t_ref[...], h,
                        preferred_element_type=jnp.float32) + enc_b2_ref[...]
            h = jnp.maximum(h, 0.0)
            if n2p != n2_valid:
                h = jnp.where(valid, h, neg_big)                        # mask pads
            g_b = jnp.max(h, axis=-1, keepdims=True)                    # (H, 1)
            # voxel projection c[-1]: lane-dense (1, V) row via VPU + sublane reduce
            vox_ref[b] = jnp.sum(g_b * enc_wv_ref[...], axis=0, keepdims=True)
            g_cols.append(g_b)
        g_all = jnp.concatenate(g_cols, axis=1) if bblk > 1 else g_cols[0]   # (H, BBLK)
        # batched conditioning term, persists in VMEM scratch across N1 tiles
        c_ref[...] = jnp.dot(dec_wct_ref[...], g_all,
                             preferred_element_type=jnp.float32)        # (H, BBLK)

    # ---- Decoder: conditional MLP over this query-point tile -----------------
    bo = dec_bo_ref[0]                          # scalar output bias (SMEM)
    for b in range(bblk):
        p_b = p_ref[b]                                                  # (4, TN1)
        net = jnp.dot(dec_wpa_ref[...], p_b,
                      preferred_element_type=jnp.float32) + c_ref[:, b:b + 1]
        net = jnp.maximum(net, 0.0)
        net = jnp.dot(dec_wht_ref[...], net,
                      preferred_element_type=jnp.float32) + dec_bh_ref[...]
        net = jnp.maximum(net, 0.0)                                     # (H, TN1)
        logits_ref[b] = (jnp.sum(dec_wo_ref[...] * net, axis=0, keepdims=True)
                         + bo)                                          # (1, TN1)


# ----------------------------------------------------------------------------
# Wrapper-side layout plumbing (fused by XLA under jit)
# ----------------------------------------------------------------------------
def _to_channels_major(x, b_pad, n_pad):
    """[B, N, 3] -> [b_pad, 4, n_pad]: rows 0..2 xyz, row 3 = 1.0 (bias); pads 0."""
    B, N, _ = x.shape
    xt = jnp.transpose(x, (0, 2, 1))                       # (B, 3, N)
    ones = jnp.ones((B, 1, N), x.dtype)
    x4 = jnp.concatenate([xt, ones], axis=1)               # (B, 4, N)
    return jnp.pad(x4, ((0, b_pad - B), (0, 0), (0, n_pad - N)))


def _prep_kernel_params(params):
    """Channels-major weights; first-layer biases folded into the K=4 ones row."""
    H = params["enc_w1"].shape[1]
    enc_w1a = jnp.concatenate(
        [params["enc_w1"].T, params["enc_b1"].reshape(H, 1)], axis=1)   # (H, 4)
    dec_wpa = jnp.concatenate(
        [params["dec_wp"].T, params["dec_b0"].reshape(H, 1)], axis=1)   # (H, 4)
    return dict(
        enc_w1a=enc_w1a,
        enc_w2t=params["enc_w2"].T,
        enc_b2=params["enc_b2"].reshape(H, 1),
        enc_wv=params["enc_wv"],                 # (H, V)
        dec_wpa=dec_wpa,
        dec_wct=params["dec_wc"].T,
        dec_wht=params["dec_wh"].T,
        dec_bh=params["dec_bh"].reshape(H, 1),
        dec_wo=params["dec_wo"],                 # (H, 1)
        dec_bo=params["dec_bo"].reshape(1),      # (1,) scalar -> 1-D SMEM
    )


# ----------------------------------------------------------------------------
# OccupancyNetwork.forward equivalent
# ----------------------------------------------------------------------------
@functools.partial(jax.jit, static_argnames=("voxel_res", "bblk", "tile_n1"))
def occupancy_network_forward(p, inputs, params, voxel_res=8, bblk=None, tile_n1=None):
    """p: [B,N1,3] query points, inputs: [B,N2,3] conditioning point cloud.

    Returns [logits [B,1,N1], zeros [B], c[-1] voxel grid [B,1,W,H,D]]."""
    B, N1, _ = p.shape
    _, N2, _ = inputs.shape
    H = params["enc_w1"].shape[1]
    V = voxel_res ** 3

    # Batch-block size: keep the batch grid axis >= 2 when possible (v7x megacore).
    if bblk is None:
        bblk = max(1, min(8, B // 2)) if B >= 2 else 1
    # Query-point tile: lane multiple, capped so the live (H, TN1) block stays small.
    if tile_n1 is None:
        tile_n1 = min(1024, _round_up(N1, 128))
    tile_n1 = _round_up(tile_n1, 128)

    n1p = _round_up(N1, tile_n1)
    n2p = _round_up(N2, 128)
    nb = pl.cdiv(B, bblk)
    b_pad = nb * bblk
    nj = n1p // tile_n1

    kp = _prep_kernel_params(params)
    p_cm = _to_channels_major(p, b_pad, n1p)        # (b_pad, 4, n1p)
    x_cm = _to_channels_major(inputs, b_pad, n2p)   # (b_pad, 4, n2p)

    rep = lambda b, j: (0, 0)   # resident weight blocks (index never changes)

    flops = 2 * b_pad * (4 * H * n2p + H * H * n2p + H * V + H * H
                         + 4 * H * n1p + H * H * n1p + H * n1p)
    bytes_accessed = 4 * (p_cm.size + x_cm.size + b_pad * n1p + b_pad * V
                          + sum(int(v.size) for v in kp.values()))

    kernel = functools.partial(_onet_kernel, bblk, N2)

    logits_p, vox_p = pl.pallas_call(
        kernel,
        out_shape=(
            jax.ShapeDtypeStruct((b_pad, 1, n1p), jnp.float32),
            jax.ShapeDtypeStruct((b_pad, 1, V), jnp.float32),
        ),
        grid=(nb, nj),
        in_specs=[
            pl.BlockSpec((bblk, 4, tile_n1), lambda b, j: (b, 0, j)),  # query pts
            pl.BlockSpec((bblk, 4, n2p), lambda b, j: (b, 0, 0)),      # input cloud
            pl.BlockSpec((H, 4), rep),                                 # enc W1|b1
            pl.BlockSpec((H, H), rep),                                 # enc W2^T
            pl.BlockSpec((H, 1), rep),                                 # enc b2
            pl.BlockSpec((H, V), rep),                                 # voxel proj
            pl.BlockSpec((H, 4), rep),                                 # dec Wp|b0
            pl.BlockSpec((H, H), rep),                                 # dec Wc^T
            pl.BlockSpec((H, H), rep),                                 # dec Wh^T
            pl.BlockSpec((H, 1), rep),                                 # dec bh
            pl.BlockSpec((H, 1), rep),                                 # dec Wo
            pl.BlockSpec(memory_space=pltpu.MemorySpace.SMEM),         # dec bo (1,)
        ],
        out_specs=[
            pl.BlockSpec((bblk, 1, tile_n1), lambda b, j: (b, 0, j)),  # logits
            pl.BlockSpec((bblk, 1, V), lambda b, j: (b, 0, 0)),        # voxel (resident over j)
        ],
        scratch_shapes=[pltpu.VMEM((H, bblk), jnp.float32)],           # conditioning term
        compiler_params=pltpu.CompilerParams(
            dimension_semantics=("parallel", "arbitrary")),
        cost_estimate=pl.CostEstimate(
            flops=flops, transcendentals=0, bytes_accessed=bytes_accessed),
    )(p_cm, x_cm,
      kp["enc_w1a"], kp["enc_w2t"], kp["enc_b2"], kp["enc_wv"],
      kp["dec_wpa"], kp["dec_wct"], kp["dec_wht"], kp["dec_bh"],
      kp["dec_wo"], kp["dec_bo"])

    logits = logits_p[:B, :, :N1]
    voxel = vox_p[:B, 0, :].reshape(B, 1, voxel_res, voxel_res, voxel_res)

    # occ is None -> z sampled from prior p0_z = Normal(empty) => empty [B, 0] latent.
    # TODO(synk): non-trivial latent path (encoder_latent / infer_z / rsample) is not
    # exercised by the default forward (z_dim == 0), so z carries no information.
    return [logits, jnp.zeros((B,), jnp.float32), voxel]


# ----------------------------------------------------------------------------
# Deterministic parameter initialization (natural (in, out) layout)
# ----------------------------------------------------------------------------
def init_params(key, hidden=32, voxel_res=8):
    V = voxel_res ** 3
    keys = jax.random.split(key, 10)
    s = 0.1
    return {
        # encoder (PointNet-style)
        "enc_w1": s * jax.random.normal(keys[0], (3, hidden), jnp.float32),
        "enc_b1": s * jax.random.normal(keys[1], (1, hidden), jnp.float32),
        "enc_w2": s * jax.random.normal(keys[2], (hidden, hidden), jnp.float32),
        "enc_b2": s * jax.random.normal(keys[3], (1, hidden), jnp.float32),
        "enc_wv": s * jax.random.normal(keys[4], (hidden, V), jnp.float32),
        # decoder (conditional MLP)
        "dec_wp": s * jax.random.normal(keys[5], (3, hidden), jnp.float32),
        "dec_wc": s * jax.random.normal(keys[6], (hidden, hidden), jnp.float32),
        "dec_b0": s * jax.random.normal(keys[7], (1, hidden), jnp.float32),
        "dec_wh": s * jax.random.normal(keys[8], (hidden, hidden), jnp.float32),
        "dec_bh": jnp.zeros((1, hidden), jnp.float32),
        "dec_wo": s * jax.random.normal(keys[9], (hidden, 1), jnp.float32),
        "dec_bo": jnp.zeros((1, 1), jnp.float32),
    }


# Pure-JAX reference (points-major), for a correctness check of the kernel.
def _reference_forward(p, inputs, params, voxel_res):
    B = p.shape[0]
    with jax.default_matmul_precision("float32"):
        h = jnp.maximum(inputs @ params["enc_w1"] + params["enc_b1"], 0.0)
        h = jnp.maximum(h @ params["enc_w2"] + params["enc_b2"], 0.0)
        g = jnp.max(h, axis=1)                                          # (B, H)
        vox = (g @ params["enc_wv"]).reshape(B, 1, voxel_res, voxel_res, voxel_res)
        net = p @ params["dec_wp"] + (g @ params["dec_wc"])[:, None, :] + params["dec_b0"]
        net = jnp.maximum(net, 0.0)
        net = jnp.maximum(net @ params["dec_wh"] + params["dec_bh"], 0.0)
        logits = jnp.swapaxes(net @ params["dec_wo"] + params["dec_bo"], 1, 2)  # (B,1,N1)
    return logits, vox


if __name__ == "__main__":
    key = jax.random.PRNGKey(0)
    k_p, k_in, k_par = jax.random.split(key, 3)

    # --- Config 1: small canonical shapes (bblk=1 -> 2-long parallel batch grid) ---
    B, N1, N2, H, VR = 2, 128, 64, 32, 8
    p = jax.random.uniform(k_p, (B, N1, 3), jnp.float32, minval=-0.5, maxval=0.5)
    inputs = jax.random.uniform(k_in, (B, N2, 3), jnp.float32, minval=-0.5, maxval=0.5)
    params = init_params(k_par, hidden=H, voxel_res=VR)

    logits, zeros_b, voxel = occupancy_network_forward(p, inputs, params, voxel_res=VR)
    jax.block_until_ready((logits, zeros_b, voxel))

    assert logits.shape == (B, 1, N1)
    assert zeros_b.shape == (B,)
    assert voxel.shape == (B, 1, VR, VR, VR)

    ref_logits, ref_voxel = _reference_forward(p, inputs, params, VR)
    assert jnp.allclose(logits, ref_logits, atol=2e-3, rtol=2e-3)
    assert jnp.allclose(voxel, ref_voxel, atol=2e-3, rtol=2e-3)

    # --- Config 2: multi-batch-per-block path (bblk=2), ragged N2/N1, tiled N1 ---
    B2, N1b, N2b = 5, 200, 100
    p2 = jax.random.uniform(jax.random.PRNGKey(1), (B2, N1b, 3), jnp.float32,
                            minval=-0.5, maxval=0.5)
    in2 = jax.random.uniform(jax.random.PRNGKey(2), (B2, N2b, 3), jnp.float32,
                             minval=-0.5, maxval=0.5)
    logits2, _, voxel2 = occupancy_network_forward(p2, in2, params, voxel_res=VR,
                                                   bblk=2, tile_n1=128)
    jax.block_until_ready((logits2, voxel2))
    ref_logits2, ref_voxel2 = _reference_forward(p2, in2, params, VR)
    assert logits2.shape == (B2, 1, N1b)
    assert jnp.allclose(logits2, ref_logits2, atol=2e-3, rtol=2e-3)
    assert jnp.allclose(voxel2, ref_voxel2, atol=2e-3, rtol=2e-3)

    print("KERNEL_OK")
</pallas_src>

<mosaic_0001>
module attributes {stable_mosaic.version = 11 : i64} {
  func.func @_onet_kernel(%arg0: i32, %arg1: i32, %arg2: memref<1x4x128xf32, #tpu.memory_space<vmem>>, %arg3: memref<1x4x128xf32, #tpu.memory_space<vmem>>, %arg4: memref<32x4xf32, #tpu.memory_space<vmem>>, %arg5: memref<32x32xf32, #tpu.memory_space<vmem>>, %arg6: memref<32x1xf32, #tpu.memory_space<vmem>>, %arg7: memref<32x512xf32, #tpu.memory_space<vmem>>, %arg8: memref<32x4xf32, #tpu.memory_space<vmem>>, %arg9: memref<32x32xf32, #tpu.memory_space<vmem>>, %arg10: memref<32x32xf32, #tpu.memory_space<vmem>>, %arg11: memref<32x1xf32, #tpu.memory_space<vmem>>, %arg12: memref<32x1xf32, #tpu.memory_space<vmem>>, %arg13: memref<1xf32, #tpu.memory_space<smem>>, %arg14: memref<1x1x128xf32, #tpu.memory_space<vmem>>, %arg15: memref<1x1x512xf32, #tpu.memory_space<vmem>>, %arg16: memref<32x1xf32, #tpu.memory_space<vmem>>) attributes {dimension_semantics = [#tpu.dimension_semantics<parallel>, #tpu.dimension_semantics<arbitrary>], iteration_bounds = array<i64: 2, 1>, scalar_prefetch = 0 : i64, scratch_operands = 1 : i64, tpu.core_type = #tpu.core_type<tc>, window_params = [{transform_indices = @transform_0, window_bounds = array<i64: 1, 4, 128>}, {transform_indices = @transform_1, window_bounds = array<i64: 1, 4, 128>}, {pipeline_mode = #tpu.pipeline_mode<synchronous>, transform_indices = @transform_2, window_bounds = array<i64: 32, 4>}, {pipeline_mode = #tpu.pipeline_mode<synchronous>, transform_indices = @transform_3, window_bounds = array<i64: 32, 32>}, {pipeline_mode = #tpu.pipeline_mode<synchronous>, transform_indices = @transform_4, window_bounds = array<i64: 32, 1>}, {pipeline_mode = #tpu.pipeline_mode<synchronous>, transform_indices = @transform_5, window_bounds = array<i64: 32, 512>}, {pipeline_mode = #tpu.pipeline_mode<synchronous>, transform_indices = @transform_6, window_bounds = array<i64: 32, 4>}, {pipeline_mode = #tpu.pipeline_mode<synchronous>, transform_indices = @transform_7, window_bounds = array<i64: 32, 32>}, {pipeline_mode = #tpu.pipeline_mode<synchronous>, transform_indices = @transform_8, window_bounds = array<i64: 32, 32>}, {pipeline_mode = #tpu.pipeline_mode<synchronous>, transform_indices = @transform_9, window_bounds = array<i64: 32, 1>}, {pipeline_mode = #tpu.pipeline_mode<synchronous>, transform_indices = @transform_10, window_bounds = array<i64: 32, 1>}, {transform_indices = @transform_11, window_bounds = array<i64: 1>}, {transform_indices = @transform_12, window_bounds = array<i64: 1, 1, 128>}, {transform_indices = @transform_13, window_bounds = array<i64: 1, 1, 512>}]} {
    %c0_i32 = arith.constant 0 : i32
    %0 = arith.cmpi eq, %arg1, %c0_i32 : i32
    %1 = arith.extui %0 : i1 to i32
    %c0_i32_0 = arith.constant 0 : i32
    %2 = arith.cmpi ne, %1, %c0_i32_0 : i32
    scf.if %2 {
      %30 = tpu.iota {dimensions = array<i32: 1>} : vector<1x128xi32>
      %c64_i32 = arith.constant 64 : i32
      %31 = vector.broadcast %c64_i32 : i32 to vector<1x128xi32>
      %32 = arith.cmpi slt, %30, %31 : vector<1x128xi32>
      %c0_21 = arith.constant 0 : index
      %c0_22 = arith.constant 0 : index
      %c0_23 = arith.constant 0 : index
      %33 = vector.load %arg3[%c0_21, %c0_22, %c0_23] : memref<1x4x128xf32, #tpu.memory_space<vmem>>, vector<1x4x128xf32>
      %34 = vector.shape_cast %33 : vector<1x4x128xf32> to vector<4x128xf32>
      %c0_24 = arith.constant 0 : index
      %c0_25 = arith.constant 0 : index
      %35 = vector.load %arg4[%c0_24, %c0_25] : memref<32x4xf32, #tpu.memory_space<vmem>>, vector<32x4xf32>
      %cst_26 = arith.constant dense<0.000000e+00> : vector<32x128xf32>
      %36 = tpu.matmul %35, %34, %cst_26 {dimension_numbers = #tpu.dot_dimension_numbers<[1], [0], [0], [1], [0, 0, 1, 1], [], []>} : vector<32x4xf32>, vector<4x128xf32>, vector<32x128xf32> -> vector<32x128xf32>
      %cst_27 = arith.constant 0.000000e+00 : f32
      %37 = vector.broadcast %cst_27 : f32 to vector<32x128xf32>
      %38 = arith.maximumf %36, %37 : vector<32x128xf32>
      %c0_28 = arith.constant 0 : index
      %c0_29 = arith.constant 0 : index
      %39 = vector.load %arg5[%c0_28, %c0_29] : memref<32x32xf32, #tpu.memory_space<vmem>>, vector<32x32xf32>
      %cst_30 = arith.constant dense<0.000000e+00> : vector<32x128xf32>
      %40 = tpu.matmul %39, %38, %cst_30 {dimension_numbers = #tpu.dot_dimension_numbers<[1], [0], [0], [1], [0, 0, 1, 1], [], []>} : vector<32x32xf32>, vector<32x128xf32>, vector<32x128xf32> -> vector<32x128xf32>
      %c0_31 = arith.constant 0 : index
      %c0_32 = arith.constant 0 : index
      %41 = vector.load %arg6[%c0_31, %c0_32] : memref<32x1xf32, #tpu.memory_space<vmem>>, vector<32x1xf32>
      %42 = vector.broadcast %41 : vector<32x1xf32> to vector<32x128xf32>
      %43 = arith.addf %40, %42 : vector<32x128xf32>
      %cst_33 = arith.constant 0.000000e+00 : f32
      %44 = vector.broadcast %cst_33 : f32 to vector<32x128xf32>
      %45 = arith.maximumf %43, %44 : vector<32x128xf32>
      %cst_34 = arith.constant -3.40282347E+38 : f32
      %46 = vector.shape_cast %32 : vector<1x128xi1> to vector<1x128xi1>
      %47 = vector.broadcast %46 : vector<1x128xi1> to vector<32x128xi1>
      %48 = vector.broadcast %cst_34 : f32 to vector<32x128xf32>
      %49 = arith.select %47, %45, %48 : vector<32x128xi1>, vector<32x128xf32>
      %cst_35 = arith.constant dense<0xFF800000> : vector<32xf32>
      %50 = vector.multi_reduction <maximumf>, %49, %cst_35 [1] : vector<32x128xf32> to vector<32xf32>
      %51 = vector.shape_cast %50 : vector<32xf32> to vector<32x1xf32>
      %c0_36 = arith.constant 0 : index
      %c0_37 = arith.constant 0 : index
      %52 = vector.load %arg7[%c0_36, %c0_37] : memref<32x512xf32, #tpu.memory_space<vmem>>, vector<32x512xf32>
      %53 = vector.broadcast %51 : vector<32x1xf32> to vector<32x512xf32>
      %54 = arith.mulf %53, %52 : vector<32x512xf32>
      %cst_38 = arith.constant dense<0.000000e+00> : vector<512xf32>
      %55 = vector.multi_reduction <add>, %54, %cst_38 [0] : vector<32x512xf32> to vector<512xf32>
      %56 = vector.shape_cast %55 : vector<512xf32> to vector<1x512xf32>
      %c0_39 = arith.constant 0 : index
      %c0_40 = arith.constant 0 : index
      %c0_41 = arith.constant 0 : index
      %57 = vector.load %arg15[%c0_39, %c0_40, %c0_41] : memref<1x1x512xf32, #tpu.memory_space<vmem>>, vector<1x1x512xf32>
      %58 = vector.shape_cast %57 : vector<1x1x512xf32> to vector<1x512xf32>
      %59 = vector.shape_cast %56 : vector<1x512xf32> to vector<1x1x512xf32>
      tpu.vector_store %arg15[%c0_39, %c0_40, %c0_41], %59 {strides = array<i32>} : memref<1x1x512xf32, #tpu.memory_space<vmem>>, vector<1x1x512xf32>,
      %c0_42 = arith.constant 0 : index
      %c0_43 = arith.constant 0 : index
      %60 = vector.load %arg9[%c0_42, %c0_43] : memref<32x32xf32, #tpu.memory_space<vmem>>, vector<32x32xf32>
      %cst_44 = arith.constant dense<0.000000e+00> : vector<32x1xf32>
      %61 = tpu.matmul %60, %51, %cst_44 {dimension_numbers = #tpu.dot_dimension_numbers<[1], [0], [0], [1], [0, 0, 1, 1], [], []>} : vector<32x32xf32>, vector<32x1xf32>, vector<32x1xf32> -> vector<32x1xf32>
      %c0_45 = arith.constant 0 : index
      %c0_46 = arith.constant 0 : index
      %62 = vector.load %arg16[%c0_45, %c0_46] : memref<32x1xf32, #tpu.memory_space<vmem>>, vector<32x1xf32>
      tpu.vector_store %arg16[%c0_45, %c0_46], %61 {strides = array<i32>} : memref<32x1xf32, #tpu.memory_space<vmem>>, vector<32x1xf32>,
    } else {
    }
    %c0 = arith.constant 0 : index
    %3 = memref.load %arg13[%c0] : memref<1xf32, #tpu.memory_space<smem>>
    %c0_1 = arith.constant 0 : index
    %c0_2 = arith.constant 0 : index
    %c0_3 = arith.constant 0 : index
    %4 = vector.load %arg2[%c0_1, %c0_2, %c0_3] : memref<1x4x128xf32, #tpu.memory_space<vmem>>, vector<1x4x128xf32>
    %5 = vector.shape_cast %4 : vector<1x4x128xf32> to vector<4x128xf32>
    %c0_4 = arith.constant 0 : index
    %c0_5 = arith.constant 0 : index
    %6 = vector.load %arg8[%c0_4, %c0_5] : memref<32x4xf32, #tpu.memory_space<vmem>>, vector<32x4xf32>
    %cst = arith.constant dense<0.000000e+00> : vector<32x128xf32>
    %7 = tpu.matmul %6, %5, %cst {dimension_numbers = #tpu.dot_dimension_numbers<[1], [0], [0], [1], [0, 0, 1, 1], [], []>} : vector<32x4xf32>, vector<4x128xf32>, vector<32x128xf32> -> vector<32x128xf32>
    %c0_6 = arith.constant 0 : index
    %c0_7 = arith.constant 0 : index
    %8 = vector.load %arg16[%c0_6, %c0_7] : memref<32x1xf32, #tpu.memory_space<vmem>>, vector<32x1xf32>
    %9 = vector.broadcast %8 : vector<32x1xf32> to vector<32x128xf32>
    %10 = arith.addf %7, %9 : vector<32x128xf32>
    %cst_8 = arith.constant 0.000000e+00 : f32
    %11 = vector.broadcast %cst_8 : f32 to vector<32x128xf32>
    %12 = arith.maximumf %10, %11 : vector<32x128xf32>
    %c0_9 = arith.constant 0 : index
    %c0_10 = arith.constant 0 : index
    %13 = vector.load %arg10[%c0_9, %c0_10] : memref<32x32xf32, #tpu.memory_space<vmem>>, vector<32x32xf32>
    %cst_11 = arith.constant dense<0.000000e+00> : vector<32x128xf32>
    %14 = tpu.matmul %13, %12, %cst_11 {dimension_numbers = #tpu.dot_dimension_numbers<[1], [0], [0], [1], [0, 0, 1, 1], [], []>} : vector<32x32xf32>, vector<32x128xf32>, vector<32x128xf32> -> vector<32x128xf32>
    %c0_12 = arith.constant 0 : index
    %c0_13 = arith.constant 0 : index
    %15 = vector.load %arg11[%c0_12, %c0_13] : memref<32x1xf32, #tpu.memory_space<vmem>>, vector<32x1xf32>
    %16 = vector.broadcast %15 : vector<32x1xf32> to vector<32x128xf32>
    %17 = arith.addf %14, %16 : vector<32x128xf32>
    %cst_14 = arith.constant 0.000000e+00 : f32
    %18 = vector.broadcast %cst_14 : f32 to vector<32x128xf32>
    %19 = arith.maximumf %17, %18 : vector<32x128xf32>
    %c0_15 = arith.constant 0 : index
    %c0_16 = arith.constant 0 : index
    %20 = vector.load %arg12[%c0_15, %c0_16] : memref<32x1xf32, #tpu.memory_space<vmem>>, vector<32x1xf32>
    %21 = vector.broadcast %20 : vector<32x1xf32> to vector<32x128xf32>
    %22 = arith.mulf %21, %19 : vector<32x128xf32>
    %cst_17 = arith.constant dense<0.000000e+00> : vector<128xf32>
    %23 = vector.multi_reduction <add>, %22, %cst_17 [0] : vector<32x128xf32> to vector<128xf32>
    %24 = vector.shape_cast %23 : vector<128xf32> to vector<1x128xf32>
    %25 = vector.broadcast %3 : f32 to vector<1x128xf32>
    %26 = arith.addf %24, %25 : vector<1x128xf32>
    %c0_18 = arith.constant 0 : index
    %c0_19 = arith.constant 0 : index
    %c0_20 = arith.constant 0 : index
    %27 = vector.load %arg14[%c0_18, %c0_19, %c0_20] : memref<1x1x128xf32, #tpu.memory_space<vmem>>, vector<1x1x128xf32>
    %28 = vector.shape_cast %27 : vector<1x1x128xf32> to vector<1x128xf32>
    %29 = vector.shape_cast %26 : vector<1x128xf32> to vector<1x1x128xf32>
    tpu.vector_store %arg14[%c0_18, %c0_19, %c0_20], %29 {strides = array<i32>} : memref<1x1x128xf32, #tpu.memory_space<vmem>>, vector<1x1x128xf32>,
    return
  }
  func.func @transform_0(%arg0: i32, %arg1: i32) -> (i32, i32, i32) {
    %c0_i32 = arith.constant 0 : i32
    %c0_i32_0 = arith.constant 0 : i32
    return %arg0, %c0_i32, %arg1 : i32, i32, i32
  }
  func.func @transform_1(%arg0: i32, %arg1: i32) -> (i32, i32, i32) {
    %c0_i32 = arith.constant 0 : i32
    %c0_i32_0 = arith.constant 0 : i32
    %c0_i32_1 = arith.constant 0 : i32
    return %arg0, %c0_i32, %c0_i32_0 : i32, i32, i32
  }
  func.func @transform_2(%arg0: i32, %arg1: i32) -> (i32, i32) {
    %c0_i32 = arith.constant 0 : i32
    %c0_i32_0 = arith.constant 0 : i32
    %c0_i32_1 = arith.constant 0 : i32
    return %c0_i32, %c0_i32_0 : i32, i32
  }
  func.func @transform_3(%arg0: i32, %arg1: i32) -> (i32, i32) {
    %c0_i32 = arith.constant 0 : i32
    %c0_i32_0 = arith.constant 0 : i32
    %c0_i32_1 = arith.constant 0 : i32
    return %c0_i32, %c0_i32_0 : i32, i32
  }
  func.func @transform_4(%arg0: i32, %arg1: i32) -> (i32, i32) {
    %c0_i32 = arith.constant 0 : i32
    %c0_i32_0 = arith.constant 0 : i32
    %c0_i32_1 = arith.constant 0 : i32
    return %c0_i32, %c0_i32_0 : i32, i32
  }
  func.func @transform_5(%arg0: i32, %arg1: i32) -> (i32, i32) {
    %c0_i32 = arith.constant 0 : i32
    %c0_i32_0 = arith.constant 0 : i32
    %c0_i32_1 = arith.constant 0 : i32
    return %c0_i32, %c0_i32_0 : i32, i32
  }
  func.func @transform_6(%arg0: i32, %arg1: i32) -> (i32, i32) {
    %c0_i32 = arith.constant 0 : i32
    %c0_i32_0 = arith.constant 0 : i32
    %c0_i32_1 = arith.constant 0 : i32
    return %c0_i32, %c0_i32_0 : i32, i32
  }
  func.func @transform_7(%arg0: i32, %arg1: i32) -> (i32, i32) {
    %c0_i32 = arith.constant 0 : i32
    %c0_i32_0 = arith.constant 0 : i32
    %c0_i32_1 = arith.constant 0 : i32
    return %c0_i32, %c0_i32_0 : i32, i32
  }
  func.func @transform_8(%arg0: i32, %arg1: i32) -> (i32, i32) {
    %c0_i32 = arith.constant 0 : i32
    %c0_i32_0 = arith.constant 0 : i32
    %c0_i32_1 = arith.constant 0 : i32
    return %c0_i32, %c0_i32_0 : i32, i32
  }
  func.func @transform_9(%arg0: i32, %arg1: i32) -> (i32, i32) {
    %c0_i32 = arith.constant 0 : i32
    %c0_i32_0 = arith.constant 0 : i32
    %c0_i32_1 = arith.constant 0 : i32
    return %c0_i32, %c0_i32_0 : i32, i32
  }
  func.func @transform_10(%arg0: i32, %arg1: i32) -> (i32, i32) {
    %c0_i32 = arith.constant 0 : i32
    %c0_i32_0 = arith.constant 0 : i32
    %c0_i32_1 = arith.constant 0 : i32
    return %c0_i32, %c0_i32_0 : i32, i32
  }
  func.func @transform_11(%arg0: i32, %arg1: i32) -> i32 {
    %c0_i32 = arith.constant 0 : i32
    %c0_i32_0 = arith.constant 0 : i32
    return %c0_i32 : i32
  }
  func.func @transform_12(%arg0: i32, %arg1: i32) -> (i32, i32, i32) {
    %c0_i32 = arith.constant 0 : i32
    %c0_i32_0 = arith.constant 0 : i32
    return %arg0, %c0_i32, %arg1 : i32, i32, i32
  }
  func.func @transform_13(%arg0: i32, %arg1: i32) -> (i32, i32, i32) {
    %c0_i32 = arith.constant 0 : i32
    %c0_i32_0 = arith.constant 0 : i32
    %c0_i32_1 = arith.constant 0 : i32
    return %arg0, %c0_i32, %c0_i32_0 : i32, i32, i32
  }
}

</mosaic_0001>

<llo_original>
// kernel: squeeze.1
$region0: #{squeeze.1}
  %s0 = inlined_call_operand.vmem [shape: f32[2,512], index: 0, kind: input, shape index: {}]
  %s1 = inlined_call_operand.hbm [shape: f32[2,1,8,8,8], index: 1, kind: output, shape index: {}]
  $region1: #{squeeze.1} parent=0
    #allocation0 [shape = 'u8[65536]{0}', space=vmem, size = 0x10000, scoped, tag = 'operand span for operand 1']
    #allocation1 [shape = 's32[1]{0}', space=sflag, size = 0x4, scoped, tag = 'scoped memory for squeeze.1']
    #allocation2 [shape = 'u8[16384]{0}', space=vmem, size = 0x4000, scoped, tag = 'scoped mem for input reshape']
    %2 = vsyncpa [#allocation1], 0
    %s4 = sshllo.u32 0, 2
    %s5 = smul.addr 2, 3
    %s6 = scalar_lea.vmem %s0, %s5
    %v7 = vld [vmem:[%s6] sm:%s4]
    %s8 = scalar_lea.vmem [#allocation2], 24
    %9 = vst [vmem:[%s8] sm:%s4] %v7
    %s10 = smul.addr 2, 2
    %s11 = scalar_lea.vmem %s0, %s10
    %v12 = vld [vmem:[%s11] sm:%s4]
    %s13 = scalar_lea.vmem [#allocation2], 16
    %14 = vst [vmem:[%s13] sm:%s4] %v12
    %s15 = scalar_lea.vmem %s0, 2
    %v16 = vld [vmem:[%s15] sm:%s4]
    %s17 = scalar_lea.vmem [#allocation2], 8
    %18 = vst [vmem:[%s17] sm:%s4] %v16
    %v19 = vld [vmem:[%s0] sm:%s4]
    %20 = vst [vmem:[#allocation2] sm:%s4] %v19
    %v21 = vld [vmem:[#allocation2] sm:$0x3]
    %vm22 = vcmask 64512
    %23 = vst.msk [vmem:[#allocation0] sm:$0x1] %vm22, %v21
    %s24 = scalar_lea.vmem [#allocation0], 63
    %25 = vst.msk [vmem:[%s24] sm:$0x2] %vm22, %v21
    %s26 = scalar_lea.vmem [#allocation2], 8
    %v27 = vld [vmem:[%s26] sm:$0x3]
    %vm28 = vcmask 64512
    %s29 = scalar_lea.vmem [#allocation0], 16
    %30 = vst.msk [vmem:[%s29] sm:$0x1] %vm28, %v27
    %s31 = scalar_lea.vmem [#allocation0], 79
    %32 = vst.msk [vmem:[%s31] sm:$0x2] %vm28, %v27
    %s33 = scalar_lea.vmem [#allocation2], 16
    %v34 = vld [vmem:[%s33] sm:$0x3]
    %vm35 = vcmask 64512
    %s36 = scalar_lea.vmem [#allocation0], 32
    %37 = vst.msk [vmem:[%s36] sm:$0x1] %vm35, %v34
    %s38 = scalar_lea.vmem [#allocation0], 95
    %39 = vst.msk [vmem:[%s38] sm:$0x2] %vm35, %v34
    %s40 = scalar_lea.vmem [#allocation2], 24
    %v41 = vld [vmem:[%s40] sm:$0x3]
    %vm42 = vcmask 64512
    %s43 = scalar_lea.vmem [#allocation0], 48
    %44 = vst.msk [vmem:[%s43] sm:$0x1] %vm42, %v41
    %s45 = scalar_lea.vmem [#allocation0], 111
    %46 = vst.msk [vmem:[%s45] sm:$0x2] %vm42, %v41
    %v47 = vld.sshfl [vmem:[#allocation2] sm:$0xff pattern:$0x99999180]
    %s48 = scalar_lea.vmem [#allocation2], 16
    %v49 = vld.sshfl [vmem:[%s48] sm:$0xff pattern:$0x91800000]
    %vm50 = vcmask 1047556
    %v51 = vsel %vm50, %v49, %v47
    %52 = vrot.lane.b32.xlu0 %v51, 120
    %v53 = vpop.permute.xlu0 %52
    %vm54 = vcmask 64512
    %s55 = scalar_lea.vmem [#allocation0], 1
    %56 = vst.msk [vmem:[%s55] ss:$16 sm:$0x3] %vm54, %v53
    %s57 = scalar_lea.vmem [#allocation0], 33
    %58 = vst.msk [vmem:[%s57] ss:$16 sm:$0xc] %vm54, %v53
    %s59 = scalar_lea.vmem [#allocation0], 4294967265
    %60 = vst.msk [vmem:[%s59] ss:$16 sm:$0x30] %vm54, %v53
    %s61 = scalar_lea.vmem [#allocation0], 1
    %62 = vst.msk [vmem:[%s61] ss:$16 sm:$0xc0] %vm54, %v53
    %v63 = vld.sshfl [vmem:[#allocation2] sm:$0xff pattern:$0x99999180]
    %s64 = scalar_lea.vmem [#allocation2], 16
    %v65 = vld.sshfl [vmem:[%s64] sm:$0xff pattern:$0x91800000]
    %vm66 = vcmask 1047556
    %v67 = vsel %vm66, %v65, %v63
    %68 = vrot.lane.b32.xlu0 %v67, 112
    %v69 = vpop.permute.xlu0 %68
    %vm70 = vcmask 64512
    %s71 = scalar_lea.vmem [#allocation0], 2
    %72 = vst.msk [vmem:[%s71] ss:$16 sm:$0x3] %vm70, %v69
    %s73 = scalar_lea.vmem [#allocation0], 34
    %74 = vst.msk [vmem:[%s73] ss:$16 sm:$0xc] %vm70, %v69
    %s75 = scalar_lea.vmem [#allocation0], 4294967266
    %76 = vst.msk [vmem:[%s75] ss:$16 sm:$0x30] %vm70, %v69
    %s77 = scalar_lea.vmem [#allocation0], 2
    %78 = vst.msk [vmem:[%s77] ss:$16 sm:$0xc0] %vm70, %v69
    %v79 = vld.sshfl [vmem:[#allocation2] sm:$0xff pattern:$0x99999180]
    %s80 = scalar_lea.vmem [#allocation2], 16
    %v81 = vld.sshfl [vmem:[%s80] sm:$0xff pattern:$0x91800000]
    %vm82 = vcmask 1047556
    %v83 = vsel %vm82, %v81, %v79
    %84 = vrot.lane.b32.xlu0 %v83, 104
    %v85 = vpop.permute.xlu0 %84
    %vm86 = vcmask 64512
    %s87 = scalar_lea.vmem [#allocation0], 3
    %88 = vst.msk [vmem:[%s87] ss:$16 sm:$0x3] %vm86, %v85
    %s89 = scalar_lea.vmem [#allocation0], 35
    %90 = vst.msk [vmem:[%s89] ss:$16 sm:$0xc] %vm86, %v85
    %s91 = scalar_lea.vmem [#allocation0], 4294967267
    %92 = vst.msk [vmem:[%s91] ss:$16 sm:$0x30] %vm86, %v85
    %s93 = scalar_lea.vmem [#allocation0], 3
    %94 = vst.msk [vmem:[%s93] ss:$16 sm:$0xc0] %vm86, %v85
    %v95 = vld.sshfl [vmem:[#allocation2] sm:$0xff pattern:$0x99999180]
    %s96 = scalar_lea.vmem [#allocation2], 16
    %v97 = vld.sshfl [vmem:[%s96] sm:$0xff pattern:$0x91800000]
    %vm98 = vcmask 1047556
    %v99 = vsel %vm98, %v97, %v95
    %100 = vrot.lane.b32.xlu0 %v99, 96
    %v101 = vpop.permute.xlu0 %100
    %vm102 = vcmask 64512
    %s103 = scalar_lea.vmem [#allocation0], 4
    %104 = vst.msk [vmem:[%s103] ss:$16 sm:$0x3] %vm102, %v101
    %s105 = scalar_lea.vmem [#allocation0], 36
    %106 = vst.msk [vmem:[%s105] ss:$16 sm:$0xc] %vm102, %v101
    %s107 = scalar_lea.vmem [#allocation0], 4294967268
    %108 = vst.msk [vmem:[%s107] ss:$16 sm:$0x30] %vm102, %v101
    %s109 = scalar_lea.vmem [#allocation0], 4
    %110 = vst.msk [vmem:[%s109] ss:$16 sm:$0xc0] %vm102, %v101
    %v111 = vld.sshfl [vmem:[#allocation2] sm:$0xff pattern:$0x99999180]
    %s112 = scalar_lea.vmem [#allocation2], 16
    %v113 = vld.sshfl [vmem:[%s112] sm:$0xff pattern:$0x91800000]
    %vm114 = vcmask 1047556
    %v115 = vsel %vm114, %v113, %v111
    %116 = vrot.lane.b32.xlu0 %v115, 88
    %v117 = vpop.permute.xlu0 %116
    %vm118 = vcmask 64512
    %s119 = scalar_lea.vmem [#allocation0], 5
    %120 = vst.msk [vmem:[%s119] ss:$16 sm:$0x3] %vm118, %v117
    %s121 = scalar_lea.vmem [#allocation0], 37
    %122 = vst.msk [vmem:[%s121] ss:$16 sm:$0xc] %vm118, %v117
    %s123 = scalar_lea.vmem [#allocation0], 4294967269
    %124 = vst.msk [vmem:[%s123] ss:$16 sm:$0x30] %vm118, %v117
    %s125 = scalar_lea.vmem [#allocation0], 5
    %126 = vst.msk [vmem:[%s125] ss:$16 sm:$0xc0] %vm118, %v117
    %v127 = vld.sshfl [vmem:[#allocation2] sm:$0xff pattern:$0x99999180]
    %s128 = scalar_lea.vmem [#allocation2], 16
    %v129 = vld.sshfl [vmem:[%s128] sm:$0xff pattern:$0x91800000]
    %vm130 = vcmask 1047556
    %v131 = vsel %vm130, %v129, %v127
    %132 = vrot.lane.b32.xlu0 %v131, 80
    %v133 = vpop.permute.xlu0 %132
    %vm134 = vcmask 64512
    %s135 = scalar_lea.vmem [#allocation0], 6
    %136 = vst.msk [vmem:[%s135] ss:$16 sm:$0x3] %vm134, %v133
    %s137 = scalar_lea.vmem [#allocation0], 38
    %138 = vst.msk [vmem:[%s137] ss:$16 sm:$0xc] %vm134, %v133
    %s139 = scalar_lea.vmem [#allocation0], 4294967270
    %140 = vst.msk [vmem:[%s139] ss:$16 sm:$0x30] %vm134, %v133
    %s141 = scalar_lea.vmem [#allocation0], 6
    %142 = vst.msk [vmem:[%s141] ss:$16 sm:$0xc0] %vm134, %v133
    %v143 = vld.sshfl [vmem:[#allocation2] sm:$0xff pattern:$0x99999180]
    %s144 = scalar_lea.vmem [#allocation2], 16
    %v145 = vld.sshfl [vmem:[%s144] sm:$0xff pattern:$0x91800000]
    %vm146 = vcmask 1047556
    %v147 = vsel %vm146, %v145, %v143
    %148 = vrot.lane.b32.xlu0 %v147, 72
    %v149 = vpop.permute.xlu0 %148
    %vm150 = vcmask 64512
    %s151 = scalar_lea.vmem [#allocation0], 7
    %152 = vst.msk [vmem:[%s151] ss:$16 sm:$0x3] %vm150, %v149
    %s153 = scalar_lea.vmem [#allocation0], 39
    %154 = vst.msk [vmem:[%s153] ss:$16 sm:$0xc] %vm150, %v149
    %s155 = scalar_lea.vmem [#allocation0], 4294967271
    %156 = vst.msk [vmem:[%s155] ss:$16 sm:$0x30] %vm150, %v149
    %s157 = scalar_lea.vmem [#allocation0], 7
    %158 = vst.msk [vmem:[%s157] ss:$16 sm:$0xc0] %vm150, %v149
    %v159 = vld.sshfl [vmem:[#allocation2] sm:$0xff pattern:$0x99999180]
    %s160 = scalar_lea.vmem [#allocation2], 16
    %v161 = vld.sshfl [vmem:[%s160] sm:$0xff pattern:$0x91800000]
    %vm162 = vcmask 1047556
    %v163 = vsel %vm162, %v161, %v159
    %164 = vrot.lane.b32.xlu0 %v163, 64
    %v165 = vpop.permute.xlu0 %164
    %vm166 = vcmask 64512
    %s167 = scalar_lea.vmem [#allocation0], 8
    %168 = vst.msk [vmem:[%s167] ss:$16 sm:$0x3] %vm166, %v165
    %s169 = scalar_lea.vmem [#allocation0], 40
    %170 = vst.msk [vmem:[%s169] ss:$16 sm:$0xc] %vm166, %v165
    %s171 = scalar_lea.vmem [#allocation0], 4294967272
    %172 = vst.msk [vmem:[%s171] ss:$16 sm:$0x30] %vm166, %v165
    %s173 = scalar_lea.vmem [#allocation0], 8
    %174 = vst.msk [vmem:[%s173] ss:$16 sm:$0xc0] %vm166, %v165
    %v175 = vld.sshfl [vmem:[#allocation2] sm:$0xff pattern:$0x99999180]
    %s176 = scalar_lea.vmem [#allocation2], 16
    %v177 = vld.sshfl [vmem:[%s176] sm:$0xff pattern:$0x91800000]
    %vm178 = vcmask 1047556
    %v179 = vsel %vm178, %v177, %v175
    %180 = vrot.lane.b32.xlu0 %v179, 56
    %v181 = vpop.permute.xlu0 %180
    %vm182 = vcmask 64512
    %s183 = scalar_lea.vmem [#allocation0], 9
    %184 = vst.msk [vmem:[%s183] ss:$16 sm:$0x3] %vm182, %v181
    %s185 = scalar_lea.vmem [#allocation0], 41
    %186 = vst.msk [vmem:[%s185] ss:$16 sm:$0xc] %vm182, %v181
    %s187 = scalar_lea.vmem [#allocation0], 4294967273
    %188 = vst.msk [vmem:[%s187] ss:$16 sm:$0x30] %vm182, %v181
    %s189 = scalar_lea.vmem [#allocation0], 9
    %190 = vst.msk [vmem:[%s189] ss:$16 sm:$0xc0] %vm182, %v181
    %v191 = vld.sshfl [vmem:[#allocation2] sm:$0xff pattern:$0x99999180]
    %s192 = scalar_lea.vmem [#allocation2], 16
    %v193 = vld.sshfl [vmem:[%s192] sm:$0xff pattern:$0x91800000]
    %vm194 = vcmask 1047556
    %v195 = vsel %vm194, %v193, %v191
    %196 = vrot.lane.b32.xlu0 %v195, 48
    %v197 = vpop.permute.xlu0 %196
    %vm198 = vcmask 64512
    %s199 = scalar_lea.vmem [#allocation0], 10
    %200 = vst.msk [vmem:[%s199] ss:$16 sm:$0x3] %vm198, %v197
    %s201 = scalar_lea.vmem [#allocation0], 42
    %202 = vst.msk [vmem:[%s201] ss:$16 sm:$0xc] %vm198, %v197
    %s203 = scalar_lea.vmem [#allocation0], 4294967274
    %204 = vst.msk [vmem:[%s203] ss:$16 sm:$0x30] %vm198, %v197
    %s205 = scalar_lea.vmem [#allocation0], 10
    %206 = vst.msk [vmem:[%s205] ss:$16 sm:$0xc0] %vm198, %v197
    %v207 = vld.sshfl [vmem:[#allocation2] sm:$0xff pattern:$0x99999180]
    %s208 = scalar_lea.vmem [#allocation2], 16
    %v209 = vld.sshfl [vmem:[%s208] sm:$0xff pattern:$0x91800000]
    %vm210 = vcmask 1047556
    %v211 = vsel %vm210, %v209, %v207
    %212 = vrot.lane.b32.xlu0 %v211, 40
    %v213 = vpop.permute.xlu0 %212
    %vm214 = vcmask 64512
    %s215 = scalar_lea.vmem [#allocation0], 11
    %216 = vst.msk [vmem:[%s215] ss:$16 sm:$0x3] %vm214, %v213
    %s217 = scalar_lea.vmem [#allocation0], 43
    %218 = vst.msk [vmem:[%s217] ss:$16 sm:$0xc] %vm214, %v213
    %s219 = scalar_lea.vmem [#allocation0], 4294967275
    %220 = vst.msk [vmem:[%s219] ss:$16 sm:$0x30] %vm214, %v213
    %s221 = scalar_lea.vmem [#allocation0], 11
    %222 = vst.msk [vmem:[%s221] ss:$16 sm:$0xc0] %vm214, %v213
    %v223 = vld.sshfl [vmem:[#allocation2] sm:$0xff pattern:$0x99999180]
    %s224 = scalar_lea.vmem [#allocation2], 16
    %v225 = vld.sshfl [vmem:[%s224] sm:$0xff pattern:$0x91800000]
    %vm226 = vcmask 1047556
    %v227 = vsel %vm226, %v225, %v223
    %228 = vrot.lane.b32.xlu0 %v227, 32
    %v229 = vpop.permute.xlu0 %228
    %vm230 = vcmask 64512
    %s231 = scalar_lea.vmem [#allocation0], 12
    %232 = vst.msk [vmem:[%s231] ss:$16 sm:$0x3] %vm230, %v229
    %s233 = scalar_lea.vmem [#allocation0], 44
    %234 = vst.msk [vmem:[%s233] ss:$16 sm:$0xc] %vm230, %v229
    %s235 = scalar_lea.vmem [#allocation0], 4294967276
    %236 = vst.msk [vmem:[%s235] ss:$16 sm:$0x30] %vm230, %v229
    %s237 = scalar_lea.vmem [#allocation0], 12
    %238 = vst.msk [vmem:[%s237] ss:$16 sm:$0xc0] %vm230, %v229
    %v239 = vld.sshfl [vmem:[#allocation2] sm:$0xff pattern:$0x99999180]
    %s240 = scalar_lea.vmem [#allocation2], 16
    %v241 = vld.sshfl [vmem:[%s240] sm:$0xff pattern:$0x91800000]
    %vm242 = vcmask 1047556
    %v243 = vsel %vm242, %v241, %v239
    %244 = vrot.lane.b32.xlu0 %v243, 24
    %v245 = vpop.permute.xlu0 %244
    %vm246 = vcmask 64512
    %s247 = scalar_lea.vmem [#allocation0], 13
    %248 = vst.msk [vmem:[%s247] ss:$16 sm:$0x3] %vm246, %v245
    %s249 = scalar_lea.vmem [#allocation0], 45
    %250 = vst.msk [vmem:[%s249] ss:$16 sm:$0xc] %vm246, %v245
    %s251 = scalar_lea.vmem [#allocation0], 4294967277
    %252 = vst.msk [vmem:[%s251] ss:$16 sm:$0x30] %vm246, %v245
    %s253 = scalar_lea.vmem [#allocation0], 13
    %254 = vst.msk [vmem:[%s253] ss:$16 sm:$0xc0] %vm246, %v245
    %v255 = vld.sshfl [vmem:[#allocation2] sm:$0xff pattern:$0x99999180]
    %s256 = scalar_lea.vmem [#allocation2], 16
    %v257 = vld.sshfl [vmem:[%s256] sm:$0xff pattern:$0x91800000]
    %vm258 = vcmask 1047556
    %v259 = vsel %vm258, %v257, %v255
    %260 = vrot.lane.b32.xlu0 %v259, 16
    %v261 = vpop.permute.xlu0 %260
    %vm262 = vcmask 64512
    %s263 = scalar_lea.vmem [#allocation0], 14
    %264 = vst.msk [vmem:[%s263] ss:$16 sm:$0x3] %vm262, %v261
    %s265 = scalar_lea.vmem [#allocation0], 46
    %266 = vst.msk [vmem:[%s265] ss:$16 sm:$0xc] %vm262, %v261
    %s267 = scalar_lea.vmem [#allocation0], 4294967278
    %268 = vst.msk [vmem:[%s267] ss:$16 sm:$0x30] %vm262, %v261
    %s269 = scalar_lea.vmem [#allocation0], 14
    %270 = vst.msk [vmem:[%s269] ss:$16 sm:$0xc0] %vm262, %v261
    %v271 = vld.sshfl [vmem:[#allocation2] sm:$0xff pattern:$0x99999180]
    %s272 = scalar_lea.vmem [#allocation2], 16
    %v273 = vld.sshfl [vmem:[%s272] sm:$0xff pattern:$0x91800000]
    %vm274 = vcmask 1047556
    %v275 = vsel %vm274, %v273, %v271
    %276 = vrot.lane.b32.xlu0 %v275, 8
    %v277 = vpop.permute.xlu0 %276
    %vm278 = vcmask 64512
    %s279 = scalar_lea.vmem [#allocation0], 15
    %280 = vst.msk [vmem:[%s279] ss:$16 sm:$0x3] %vm278, %v277
    %s281 = scalar_lea.vmem [#allocation0], 47
    %282 = vst.msk [vmem:[%s281] ss:$16 sm:$0xc] %vm278, %v277
    %s283 = scalar_lea.vmem [#allocation0], 4294967279
    %284 = vst.msk [vmem:[%s283] ss:$16 sm:$0x30] %vm278, %v277
    %s285 = scalar_lea.vmem [#allocation0], 15
    %286 = vst.msk [vmem:[%s285] ss:$16 sm:$0xc0] %vm278, %v277
    %s288 = ssub.s32 2048, 2048
    %289 = vsyncadd [#allocation1], %s288
    %s291 = sshll.u32 [#allocation0], 4
    %s292 = int_to_ptr.vmem [resolvable:$true] %s291
    %294 = dma.vmem_to_hbm [thread:$0]  %s292, 2048, %s1, [#allocation1]
    %295 = dma.done [#allocation1], 2048
    %296 = vsyncpa [#allocation1], 1

// kernel: occupancy_network_forward.1
$region0: #{occupancy_network_forward.1}
  #allocation0 [shape = 'u32[]', space=smem, size = 0x4, offset = 0x4, fixed_abs, tag = 'smem constant byte address 0x4 - core index']
  #allocation1 [shape = 'u32[144,128]{1,0:T(1,128)}', space=vmem, size = 0x12000, scoped, tag = 'internal scratch']
  #allocation2 [shape = 'f32[32,1]{1,0:T(8,128)}', space=vmem, size = 0x4000, scoped, tag = 'scratch operand']
  #allocation3 [shape = 'f32[1]{0:T(128)S(6)}', space=smem, size = 0x200, scoped, tag = 'scoped memory for occupancy_network_forward.1']
  %s0 = inlined_call_operand.vmem [shape: f32[2,4,128], index: 0, kind: input, shape index: {}]
  %s1 = inlined_call_operand.vmem [shape: f32[2,4,128], index: 1, kind: input, shape index: {}]
  %s2 = inlined_call_operand.vmem [shape: f32[32,4], index: 2, kind: input, shape index: {}]
  %s3 = inlined_call_operand.vmem [shape: f32[32,32], index: 3, kind: input, shape index: {}]
  %s4 = inlined_call_operand.vmem [shape: f32[32,1], index: 4, kind: input, shape index: {}]
  %s5 = inlined_call_operand.vmem [shape: f32[32,512], index: 5, kind: input, shape index: {}]
  %s6 = inlined_call_operand.vmem [shape: f32[32,4], index: 6, kind: input, shape index: {}]
  %s7 = inlined_call_operand.vmem [shape: f32[32,32], index: 7, kind: input, shape index: {}]
  %s8 = inlined_call_operand.vmem [shape: f32[32,32], index: 8, kind: input, shape index: {}]
  %s9 = inlined_call_operand.vmem [shape: f32[32,1], index: 9, kind: input, shape index: {}]
  %s10 = inlined_call_operand.vmem [shape: f32[32,1], index: 10, kind: input, shape index: {}]
  %s11 = inlined_call_operand.<no memory space> [shape: f32[1], index: 11, kind: input, shape index: {}]
  %s12 = inlined_call_operand.hbm [shape: f32[2,1,128], index: 12, kind: output, shape index: {0}]
  %s13 = inlined_call_operand.vmem [shape: f32[2,1,512], index: 13, kind: output, shape index: {1}]
  %14 = xla_tuple %s12, %s13
  %s15 = sld [smem:[#allocation0]]
  $region93: #{occupancy_network_forward.1} parent=0
    _
  %s17 = ssub.s32 1, %s15
  %s18 = scalar_select 0, %s17, %s15
  %19 = sst [smem:[#allocation3]] %s11
  $region1: #{occupancy_network_forward.1} parent=0
    #allocation4 [shape = 'u8[1024]{0}', space=vmem, size = 0x400, scoped, tag = 'output window, operand 0']
    #allocation5 [shape = 's32[2]{0}', space=sflag, size = 0x8, scoped, tag = 'scoped memory for occupancy_network_forward.1']
    %20 = vsyncpa [#allocation5], 0
    %s21 = scalar_lea.sflag [#allocation5], 1
    %22 = vsyncpa %s21, 0
    loop: start=0, step=1, limit=4
    $region2: #{occupancy_network_forward.1} parent=1 // loop_pre_header
      _
    $region3: #{occupancy_network_forward.1} parent=1 // loop_header
      %s24 = sphi 0, %s28
      %p25 = scmp.ge.s32.totalorder %s24, 4
      %s31 = sphi 0, %s43
      %s32 = sphi 0, %s39
      %s33 = sphi 0, %s31
      %s34 = sphi 0, %s32
      %s35 = sphi 0, %s33
      %s36 = sphi 0, %s34
      %s48 = sphi 0, %s50
      %s51 = sphi 0, %s48
      %s52 = sphi 0, %s51
      %s68 = sphi 0, %s52
      %s74 = sphi 0, %s76
      %s77 = sphi 0, %s74
      %s78 = sphi 0, %s77
      %s94 = sphi 0, %s78
      %s98 = sphi 0, %s98
      %s100 = sphi 0, %s98
      %s101 = sphi 0, %s100
      %s115 = sphi 0, %s101
      %s119 = sphi 0, %s119
      %s121 = sphi 0, %s119
      %s122 = sphi 0, %s121
      %s136 = sphi 0, %s122
      %s140 = sphi 0, %s140
      %s142 = sphi 0, %s140
      %s143 = sphi 0, %s142
      %s157 = sphi 0, %s143
      %s161 = sphi 0, %s161
      %s163 = sphi 0, %s161
      %s164 = sphi 0, %s163
      %s178 = sphi 0, %s164
      %s182 = sphi 0, %s182
      %s184 = sphi 0, %s182
      %s185 = sphi 0, %s184
      %s199 = sphi 0, %s185
      %s203 = sphi 0, %s203
      %s205 = sphi 0, %s203
      %s206 = sphi 0, %s205
      %s220 = sphi 0, %s206
      %s224 = sphi 0, %s224
      %s226 = sphi 0, %s224
      %s227 = sphi 0, %s226
      %s241 = sphi 0, %s227
      %s245 = sphi 0, %s245
      %s247 = sphi 0, %s245
      %s248 = sphi 0, %s247
      %s262 = sphi 0, %s248
      %s266 = sphi 0, %s266
      %s268 = sphi 0, %s266
      %s269 = sphi 0, %s268
      %s283 = sphi 0, %s269
      %s287 = sphi 0, %s287
      %s289 = sphi 0, %s287
      %s290 = sphi 0, %s289
      %s304 = sphi 0, %s290
      %s312 = sphi 0, %s314
      %s315 = sphi 0, %s312
      %s316 = sphi 0, %s315
      %s332 = sphi 0, %s316
      %s338 = sphi 0, %s340
      %s341 = sphi 0, %s338
      %s342 = sphi 0, %s341
      %s358 = sphi 0, %s342
    $region4: #{occupancy_network_forward.1} parent=1 // loop_header_branch
      %27 = sbr.rel (%p25) target = $region8
    $region5: #{occupancy_network_forward.1} parent=1 // loop_body
      %s29 = ssub.s32 %s24, 1
      %s30 = ssub.s32 %s24, 2
      %s37 = sadd.s32 1, %s32
      %p38 = scmp.ge.s32.totalorder %s37, 1
      %s39 = scalar_select %p38, 0, %s37
      %s40 = sadd.s32 1, %s31
      %s41 = scalar_select %p38, %s40, %s31
      %p42 = scmp.ge.s32.totalorder %s41, 2
      %s43 = scalar_select %p42, 0, %s41
      %s44 = ssub.s32 %s31, %s43
      %s45 = ssub.s32 %s32, %s39
      %s46 = sor.u32 %s44, %s45
      %p47 = scmp.eq.s32.totalorder %s46, 0
      %s49 = sadd.s32 %s48, 1
      %s50 = scalar_select %p47, %s48, %s49
      %p53 = pneg %p47
      %p54 = scmp.eq.s32.totalorder %s24, 1
      %p55 = por %p53, %p54
      %p56 = scmp.ne.s32.totalorder %s48, %s51
      %p57 = scmp.eq.s32.totalorder %s24, 0
      %p58 = por %p56, %p57
      %p59 = scmp.ne.s32.totalorder %s48, %s51
      %p60 = scmp.eq.s32.totalorder %s29, 1
      %p61 = por %p59, %p60
      %p62 = scmp.ne.s32.totalorder %s51, %s52
      %p63 = scmp.eq.s32.totalorder %s29, 0
      %p64 = por %p62, %p63
      %p65 = scmp.ne.s32.totalorder %s51, %s52
      %p66 = scmp.eq.s32.totalorder %s30, 1
      %p67 = por %p65, %p66
      %p69 = scmp.ne.s32.totalorder %s52, %s68
      %p70 = scmp.eq.s32.totalorder %s30, 0
      %p71 = por %p69, %p70
      %s72 = ssub.s32 %s31, %s43
      %p73 = scmp.eq.s32.totalorder %s72, 0
      %s75 = sadd.s32 %s74, 1
      %s76 = scalar_select %p73, %s74, %s75
      %p79 = pneg %p73
      %p80 = scmp.eq.s32.totalorder %s24, 1
      %p81 = por %p79, %p80
      %p82 = scmp.ne.s32.totalorder %s74, %s77
      %p83 = scmp.eq.s32.totalorder %s24, 0
      %p84 = por %p82, %p83
      %p85 = scmp.ne.s32.totalorder %s74, %s77
      %p86 = scmp.eq.s32.totalorder %s29, 1
      %p87 = por %p85, %p86
      %p88 = scmp.ne.s32.totalorder %s77, %s78
      %p89 = scmp.eq.s32.totalorder %s29, 0
      %p90 = por %p88, %p89
      %p91 = scmp.ne.s32.totalorder %s77, %s78
      %p92 = scmp.eq.s32.totalorder %s30, 1
      %p93 = por %p91, %p92
      %p95 = scmp.ne.s32.totalorder %s78, %s94
      %p96 = scmp.eq.s32.totalorder %s30, 0
      %p97 = por %p95, %p96
      %s99 = sadd.s32 %s98, 1
      %p102 = scmp.eq.s32.totalorder %s24, 1
      %p103 = scmp.ne.s32.totalorder %s98, %s100
      %p104 = scmp.eq.s32.totalorder %s24, 0
      %p105 = por %p103, %p104
      %p106 = scmp.ne.s32.totalorder %s98, %s100
      %p107 = scmp.eq.s32.totalorder %s29, 1
      %p108 = por %p106, %p107
      %p109 = scmp.ne.s32.totalorder %s100, %s101
      %p110 = scmp.eq.s32.totalorder %s29, 0
      %p111 = por %p109, %p110
      %p112 = scmp.ne.s32.totalorder %s100, %s101
      %p113 = scmp.eq.s32.totalorder %s30, 1
      %p114 = por %p112, %p113
      %p116 = scmp.ne.s32.totalorder %s101, %s115
      %p117 = scmp.eq.s32.totalorder %s30, 0
      %p118 = por %p116, %p117
      %s120 = sadd.s32 %s119, 1
      %p123 = scmp.eq.s32.totalorder %s24, 1
      %p124 = scmp.ne.s32.totalorder %s119, %s121
      %p125 = scmp.eq.s32.totalorder %s24, 0
      %p126 = por %p124, %p125
      %p127 = scmp.ne.s32.totalorder %s119, %s121
      %p128 = scmp.eq.s32.totalorder %s29, 1
      %p129 = por %p127, %p128
      %p130 = scmp.ne.s32.totalorder %s121, %s122
      %p131 = scmp.eq.s32.totalorder %s29, 0
      %p132 = por %p130, %p131
      %p133 = scmp.ne.s32.totalorder %s121, %s122
      %p134 = scmp.eq.s32.totalorder %s30, 1
      %p135 = por %p133, %p134
      %p137 = scmp.ne.s32.totalorder %s122, %s136
      %p138 = scmp.eq.s32.totalorder %s30, 0
      %p139 = por %p137, %p138
      %s141 = sadd.s32 %s140, 1
      %p144 = scmp.eq.s32.totalorder %s24, 1
      %p145 = scmp.ne.s32.totalorder %s140, %s142
      %p146 = scmp.eq.s32.totalorder %s24, 0
      %p147 = por %p145, %p146
      %p148 = scmp.ne.s32.totalorder %s140, %s142
      %p149 = scmp.eq.s32.totalorder %s29, 1
      %p150 = por %p148, %p149
      %p151 = scmp.ne.s32.totalorder %s142, %s143
      %p152 = scmp.eq.s32.totalorder %s29, 0
      %p153 = por %p151, %p152
      %p154 = scmp.ne.s32.totalorder %s142, %s143
      %p155 = scmp.eq.s32.totalorder %s30, 1
      %p156 = por %p154, %p155
      %p158 = scmp.ne.s32.totalorder %s143, %s157
      %p159 = scmp.eq.s32.totalorder %s30, 0
      %p160 = por %p158, %p159
      %s162 = sadd.s32 %s161, 1
      %p165 = scmp.eq.s32.totalorder %s24, 1
      %p166 = scmp.ne.s32.totalorder %s161, %s163
      %p167 = scmp.eq.s32.totalorder %s24, 0
      %p168 = por %p166, %p167
      %p169 = scmp.ne.s32.totalorder %s161, %s163
      %p170 = scmp.eq.s32.totalorder %s29, 1
      %p171 = por %p169, %p170
      %p172 = scmp.ne.s32.totalorder %s163, %s164
      %p173 = scmp.eq.s32.totalorder %s29, 0
      %p174 = por %p172, %p173
      %p175 = scmp.ne.s32.totalorder %s163, %s164
      %p176 = scmp.eq.s32.totalorder %s30, 1
      %p177 = por %p175, %p176
      %p179 = scmp.ne.s32.totalorder %s164, %s178
      %p180 = scmp.eq.s32.totalorder %s30, 0
      %p181 = por %p179, %p180
      %s183 = sadd.s32 %s182, 1
      %p186 = scmp.eq.s32.totalorder %s24, 1
      %p187 = scmp.ne.s32.totalorder %s182, %s184
      %p188 = scmp.eq.s32.totalorder %s24, 0
      %p189 = por %p187, %p188
      %p190 = scmp.ne.s32.totalorder %s182, %s184
      %p191 = scmp.eq.s32.totalorder %s29, 1
      %p192 = por %p190, %p191
      %p193 = scmp.ne.s32.totalorder %s184, %s185
      %p194 = scmp.eq.s32.totalorder %s29, 0
      %p195 = por %p193, %p194
      %p196 = scmp.ne.s32.totalorder %s184, %s185
      %p197 = scmp.eq.s32.totalorder %s30, 1
      %p198 = por %p196, %p197
      %p200 = scmp.ne.s32.totalorder %s185, %s199
      %p201 = scmp.eq.s32.totalorder %s30, 0
      %p202 = por %p200, %p201
      %s204 = sadd.s32 %s203, 1
      %p207 = scmp.eq.s32.totalorder %s24, 1
      %p208 = scmp.ne.s32.totalorder %s203, %s205
      %p209 = scmp.eq.s32.totalorder %s24, 0
      %p210 = por %p208, %p209
      %p211 = scmp.ne.s32.totalorder %s203, %s205
      %p212 = scmp.eq.s32.totalorder %s29, 1
      %p213 = por %p211, %p212
      %p214 = scmp.ne.s32.totalorder %s205, %s206
      %p215 = scmp.eq.s32.totalorder %s29, 0
      %p216 = por %p214, %p215
      %p217 = scmp.ne.s32.totalorder %s205, %s206
      %p218 = scmp.eq.s32.totalorder %s30, 1
      %p219 = por %p217, %p218
      %p221 = scmp.ne.s32.totalorder %s206, %s220
      %p222 = scmp.eq.s32.totalorder %s30, 0
      %p223 = por %p221, %p222
      %s225 = sadd.s32 %s224, 1
      %p228 = scmp.eq.s32.totalorder %s24, 1
      %p229 = scmp.ne.s32.totalorder %s224, %s226
      %p230 = scmp.eq.s32.totalorder %s24, 0
      %p231 = por %p229, %p230
      %p232 = scmp.ne.s32.totalorder %s224, %s226
      %p233 = scmp.eq.s32.totalorder %s29, 1
      %p234 = por %p232, %p233
      %p235 = scmp.ne.s32.totalorder %s226, %s227
      %p236 = scmp.eq.s32.totalorder %s29, 0
      %p237 = por %p235, %p236
      %p238 = scmp.ne.s32.totalorder %s226, %s227
      %p239 = scmp.eq.s32.totalorder %s30, 1
      %p240 = por %p238, %p239
      %p242 = scmp.ne.s32.totalorder %s227, %s241
      %p243 = scmp.eq.s32.totalorder %s30, 0
      %p244 = por %p242, %p243
      %s246 = sadd.s32 %s245, 1
      %p249 = scmp.eq.s32.totalorder %s24, 1
      %p250 = scmp.ne.s32.totalorder %s245, %s247
      %p251 = scmp.eq.s32.totalorder %s24, 0
      %p252 = por %p250, %p251
      %p253 = scmp.ne.s32.totalorder %s245, %s247
      %p254 = scmp.eq.s32.totalorder %s29, 1
      %p255 = por %p253, %p254
      %p256 = scmp.ne.s32.totalorder %s247, %s248
      %p257 = scmp.eq.s32.totalorder %s29, 0
      %p258 = por %p256, %p257
      %p259 = scmp.ne.s32.totalorder %s247, %s248
      %p260 = scmp.eq.s32.totalorder %s30, 1
      %p261 = por %p259, %p260
      %p263 = scmp.ne.s32.totalorder %s248, %s262
      %p264 = scmp.eq.s32.totalorder %s30, 0
      %p265 = por %p263, %p264
      %s267 = sadd.s32 %s266, 1
      %p270 = scmp.eq.s32.totalorder %s24, 1
      %p271 = scmp.ne.s32.totalorder %s266, %s268
      %p272 = scmp.eq.s32.totalorder %s24, 0
      %p273 = por %p271, %p272
      %p274 = scmp.ne.s32.totalorder %s266, %s268
      %p275 = scmp.eq.s32.totalorder %s29, 1
      %p276 = por %p274, %p275
      %p277 = scmp.ne.s32.totalorder %s268, %s269
      %p278 = scmp.eq.s32.totalorder %s29, 0
      %p279 = por %p277, %p278
      %p280 = scmp.ne.s32.totalorder %s268, %s269
      %p281 = scmp.eq.s32.totalorder %s30, 1
      %p282 = por %p280, %p281
      %p284 = scmp.ne.s32.totalorder %s269, %s283
      %p285 = scmp.eq.s32.totalorder %s30, 0
      %p286 = por %p284, %p285
      %s288 = sadd.s32 %s287, 1
      %p291 = scmp.eq.s32.totalorder %s24, 1
      %p292 = scmp.ne.s32.totalorder %s287, %s289
      %p293 = scmp.eq.s32.totalorder %s24, 0
      %p294 = por %p292, %p293
      %p295 = scmp.ne.s32.totalorder %s287, %s289
      %p296 = scmp.eq.s32.totalorder %s29, 1
      %p297 = por %p295, %p296
      %p298 = scmp.ne.s32.totalorder %s289, %s290
      %p299 = scmp.eq.s32.totalorder %s29, 0
      %p300 = por %p298, %p299
      %p301 = scmp.ne.s32.totalorder %s289, %s290
      %p302 = scmp.eq.s32.totalorder %s30, 1
      %p303 = por %p301, %p302
      %p305 = scmp.ne.s32.totalorder %s290, %s304
      %p306 = scmp.eq.s32.totalorder %s30, 0
      %p307 = por %p305, %p306
      %s308 = ssub.s32 %s31, %s43
      %s309 = ssub.s32 %s32, %s39
      %s310 = sor.u32 %s308, %s309
      %p311 = scmp.eq.s32.totalorder %s310, 0
      %s313 = sadd.s32 %s312, 1
      %s314 = scalar_select %p311, %s312, %s313
      %p317 = pneg %p311
      %p318 = scmp.eq.s32.totalorder %s24, 1
      %p319 = por %p317, %p318
      %p320 = scmp.ne.s32.totalorder %s312, %s315
      %p321 = scmp.eq.s32.totalorder %s24, 0
      %p322 = por %p320, %p321
      %p323 = scmp.ne.s32.totalorder %s312, %s315
      %p324 = scmp.eq.s32.totalorder %s29, 1
      %p325 = por %p323, %p324
      %p326 = scmp.ne.s32.totalorder %s315, %s316
      %p327 = scmp.eq.s32.totalorder %s29, 0
      %p328 = por %p326, %p327
      %p329 = scmp.ne.s32.totalorder %s315, %s316
      %p330 = scmp.eq.s32.totalorder %s30, 1
      %p331 = por %p329, %p330
      %p333 = scmp.ne.s32.totalorder %s316, %s332
      %p334 = scmp.eq.s32.totalorder %s30, 0
      %p335 = por %p333, %p334
      %s336 = ssub.s32 %s31, %s43
      %p337 = scmp.eq.s32.totalorder %s336, 0
      %s339 = sadd.s32 %s338, 1
      %s340 = scalar_select %p337, %s338, %s339
      %p343 = pneg %p337
      %p344 = scmp.eq.s32.totalorder %s24, 1
      %p345 = por %p343, %p344
      %p346 = scmp.ne.s32.totalorder %s338, %s341
      %p347 = scmp.eq.s32.totalorder %s24, 0
      %p348 = por %p346, %p347
      %p349 = scmp.ne.s32.totalorder %s338, %s341
      %p350 = scmp.eq.s32.totalorder %s29, 1
      %p351 = por %p349, %p350
      %p352 = scmp.ne.s32.totalorder %s341, %s342
      %p353 = scmp.eq.s32.totalorder %s29, 0
      %p354 = por %p352, %p353
      %p355 = scmp.ne.s32.totalorder %s341, %s342
      %p356 = scmp.eq.s32.totalorder %s30, 1
      %p357 = por %p355, %p356
      %p359 = scmp.ne.s32.totalorder %s342, %s358
      %p360 = scmp.eq.s32.totalorder %s30, 0
      %p361 = por %p359, %p360
      %p362 = scmp.le.s32.totalorder 1, %s24
      %p363 = scmp.lt.s32.totalorder %s24, 3
      %p364 = pnand %p362, %p363
      %p365 = pneg %p364
      // Predicated region
      $region9: #{occupancy_network_forward.1} parent=5 // pred_check
        _
      $region10: #{occupancy_network_forward.1} parent=5 // pred_check_branch
        %367 = sbr.rel (%p364) target = $region12
      $region11: #{occupancy_network_forward.1} parent=5 // pred_region
        %s368 = ssub.s32 %s24, 1
        // Predicated region
        $region13: #{occupancy_network_forward.1} parent=11 // pred_check
          %p369 = pneg %p111
        $region14: #{occupancy_network_forward.1} parent=11 // pred_check_branch
          %371 = sbr.rel (%p369) target = $region16
        $region15: #{occupancy_network_forward.1} parent=11 // pred_region
          _
        $region16: #{occupancy_network_forward.1} parent=11 // pred_fallthru
          _
        // Predicated region
        $region17: #{occupancy_network_forward.1} parent=11 // pred_check
          %p372 = pneg %p132
        $region18: #{occupancy_network_forward.1} parent=11 // pred_check_branch
          %374 = sbr.rel (%p372) target = $region20
        $region19: #{occupancy_network_forward.1} parent=11 // pred_region
          _
        $region20: #{occupancy_network_forward.1} parent=11 // pred_fallthru
          _
        // Predicated region
        $region21: #{occupancy_network_forward.1} parent=11 // pred_check
          %p375 = pneg %p153
        $region22: #{occupancy_network_forward.1} parent=11 // pred_check_branch
          %377 = sbr.rel (%p375) target = $region24
        $region23: #{occupancy_network_forward.1} parent=11 // pred_region
          _
        $region24: #{occupancy_network_forward.1} parent=11 // pred_fallthru
          _
        // Predicated region
        $region25: #{occupancy_network_forward.1} parent=11 // pred_check
          %p378 = pneg %p174
        $region26: #{occupancy_network_forward.1} parent=11 // pred_check_branch
          %380 = sbr.rel (%p378) target = $region28
        $region27: #{occupancy_network_forward.1} parent=11 // pred_region
          _
        $region28: #{occupancy_network_forward.1} parent=11 // pred_fallthru
          _
        // Predicated region
        $region29: #{occupancy_network_forward.1} parent=11 // pred_check
          %p381 = pneg %p195
        $region30: #{occupancy_network_forward.1} parent=11 // pred_check_branch
          %383 = sbr.rel (%p381) target = $region32
        $region31: #{occupancy_network_forward.1} parent=11 // pred_region
          _
        $region32: #{occupancy_network_forward.1} parent=11 // pred_fallthru
          _
        // Predicated region
        $region33: #{occupancy_network_forward.1} parent=11 // pred_check
          %p384 = pneg %p216
        $region34: #{occupancy_network_forward.1} parent=11 // pred_check_branch
          %386 = sbr.rel (%p384) target = $region36
        $region35: #{occupancy_network_forward.1} parent=11 // pred_region
          _
        $region36: #{occupancy_network_forward.1} parent=11 // pred_fallthru
          _
        // Predicated region
        $region37: #{occupancy_network_forward.1} parent=11 // pred_check
          %p387 = pneg %p237
        $region38: #{occupancy_network_forward.1} parent=11 // pred_check_branch
          %389 = sbr.rel (%p387) target = $region40
        $region39: #{occupancy_network_forward.1} parent=11 // pred_region
          _
        $region40: #{occupancy_network_forward.1} parent=11 // pred_fallthru
          _
        // Predicated region
        $region41: #{occupancy_network_forward.1} parent=11 // pred_check
          %p390 = pneg %p258
        $region42: #{occupancy_network_forward.1} parent=11 // pred_check_branch
          %392 = sbr.rel (%p390) target = $region44
        $region43: #{occupancy_network_forward.1} parent=11 // pred_region
          _
        $region44: #{occupancy_network_forward.1} parent=11 // pred_fallthru
          _
        // Predicated region
        $region45: #{occupancy_network_forward.1} parent=11 // pred_check
          %p393 = pneg %p279
        $region46: #{occupancy_network_forward.1} parent=11 // pred_check_branch
          %395 = sbr.rel (%p393) target = $region48
        $region47: #{occupancy_network_forward.1} parent=11 // pred_region
          _
        $region48: #{occupancy_network_forward.1} parent=11 // pred_fallthru
          _
        // Predicated region
        $region49: #{occupancy_network_forward.1} parent=11 // pred_check
          %p396 = pneg %p300
        $region50: #{occupancy_network_forward.1} parent=11 // pred_check_branch
          %398 = sbr.rel (%p396) target = $region52
        $region51: #{occupancy_network_forward.1} parent=11 // pred_region
          _
        $region52: #{occupancy_network_forward.1} parent=11 // pred_fallthru
          _
      $region12: #{occupancy_network_forward.1} parent=5 // pred_fallthru
        _
      %p399 = scmp.lt.s32.totalorder %s24, 2
      // Predicated region
      $region53: #{occupancy_network_forward.1} parent=5 // pred_check
        %p400 = pneg %p399
      $region54: #{occupancy_network_forward.1} parent=5 // pred_check_branch
        %402 = sbr.rel (%p400) target = $region56
      $region55: #{occupancy_network_forward.1} parent=5 // pred_region
        // Predicated region
        $region57: #{occupancy_network_forward.1} parent=55 // pred_check
          %p403 = pneg %p58
        $region58: #{occupancy_network_forward.1} parent=55 // pred_check_branch
          %405 = sbr.rel (%p403) target = $region60
        $region59: #{occupancy_network_forward.1} parent=55 // pred_region
          %p406 = scmp.lt.s32.totalorder %s31, 1
          %s407 = scalar_select %p406, %s31, 1
          %p408 = scmp.lt.s32.totalorder %s32, 0
          %s409 = scalar_select %p408, %s32, 0
          %s410 = sadd.s32 %s409, %s407
          %s411 = smul.addr %s410, 4
          %s412 = scalar_lea.vmem %s0, %s411
        $region60: #{occupancy_network_forward.1} parent=55 // pred_fallthru
          _
        // Predicated region
        $region61: #{occupancy_network_forward.1} parent=55 // pred_check
          %p413 = pneg %p84
        $region62: #{occupancy_network_forward.1} parent=55 // pred_check_branch
          %415 = sbr.rel (%p413) target = $region64
        $region63: #{occupancy_network_forward.1} parent=55 // pred_region
          %p416 = scmp.lt.s32.totalorder %s31, 1
          %s417 = scalar_select %p416, %s31, 1
          %s418 = smul.addr %s417, 4
          %s419 = scalar_lea.vmem %s1, %s418
        $region64: #{occupancy_network_forward.1} parent=55 // pred_fallthru
          _
      $region56: #{occupancy_network_forward.1} parent=5 // pred_fallthru
        _
      %p420 = scmp.le.s32.totalorder 1, %s24
      %p421 = scmp.lt.s32.totalorder %s24, 3
      %p422 = pnand %p420, %p421
      %p423 = pneg %p422
      // Predicated region
      $region65: #{occupancy_network_forward.1} parent=5 // pred_check
        _
      $region66: #{occupancy_network_forward.1} parent=5 // pred_check_branch
        %425 = sbr.rel (%p422) target = $region68
      $region67: #{occupancy_network_forward.1} parent=5 // pred_region
        %s426 = ssub.s32 %s24, 1
        %p427 = scmp.lt.s32.totalorder %s33, 1
        %s428 = scalar_select %p427, %s33, 1
        %p429 = scmp.lt.s32.totalorder %s34, 0
        %s430 = scalar_select %p429, %s34, 0
        %s431 = sadd.s32 %s430, %s428
        %s432 = smul.addr %s431, 4
        %s433 = scalar_lea.vmem %s0, %s432
        %p434 = pneg %p64
        %p435 = pneg %p61
        %p436 = scmp.lt.s32.totalorder %s33, 1
        %s437 = scalar_select %p436, %s33, 1
        %s438 = smul.addr %s437, 4
        %s439 = scalar_lea.vmem %s1, %s438
        %p440 = pneg %p90
        %p441 = pneg %p87
        %p442 = pneg %p111
        %p443 = pneg %p108
        %p444 = pneg %p132
        %p445 = pneg %p129
        %p446 = pneg %p153
        %p447 = pneg %p150
        %p448 = pneg %p174
        %p449 = pneg %p171
        %p450 = pneg %p195
        %p451 = pneg %p192
        %p452 = pneg %p216
        %p453 = pneg %p213
        %p454 = pneg %p237
        %p455 = pneg %p234
        %p456 = pneg %p258
        %p457 = pneg %p255
        %p458 = pneg %p279
        %p459 = pneg %p276
        %p460 = pneg %p300
        %p461 = pneg %p297
        %p462 = pneg %p328
        %p463 = pneg %p325
        %s464 = sand.u32 %s315, 1
        %s465 = scalar_lea.sflag [#allocation5], %s464
        %s466 = sand.u32 %s315, 1
        %s467 = scalar_lea.vmem [#allocation4], %s466
        %p468 = pneg %p354
        %p469 = pneg %p351
        %p470 = scmp.lt.s32.totalorder %s33, 1
        %s471 = scalar_select %p470, %s33, 1
        %s472 = smul.addr %s471, 4
        %s473 = scalar_lea.vmem %s13, %s472
        %p474 = scmp.lt.s32.totalorder %s33, 1
        %s475 = scalar_select %p474, %s33, 1
        %p476 = scmp.lt.s32.totalorder %s34, 0
        %s477 = scalar_select %p476, %s34, 0
        %s478 = sadd.s32 %s477, %s475
        %s479 = smul.addr %s478, 4
        %s480 = scalar_lea.vmem %s0, %s479
        %p481 = scmp.lt.s32.totalorder %s33, 1
        %s482 = scalar_select %p481, %s33, 1
        %s483 = smul.addr %s482, 4
        %s484 = scalar_lea.vmem %s1, %s483
        %p485 = scmp.lt.s32.totalorder %s33, 1
        %s486 = scalar_select %p485, %s33, 1
        %s487 = smul.addr %s486, 4
        %s488 = scalar_lea.vmem %s13, %s487
        %p489 = scmp.eq.s32.totalorder %s34, 0
        // Predicated region
        $region69: #{occupancy_network_forward.1} parent=67 // pred_check
          %p490 = pneg %p489
        $region70: #{occupancy_network_forward.1} parent=67 // pred_check_branch
          %492 = sbr.rel (%p490) target = $region72
        $region71: #{occupancy_network_forward.1} parent=67 // pred_region
          %v493 = vlaneseq
          %v494 = vand.u32 %v493, 127
          %vm495 = vcmp.lt.s32.totalorder %v494, 64
          %v496 = vld [vmem:[%s484] sm:$0xf]
          %v497 = vld [vmem:[%s2] sm:$0xff]
          %v498 = vld [vmem:[%s2 + $0x8] sm:$0xff]
          %v499 = vld [vmem:[%s2 + $0x10] sm:$0xff]
          %v500 = vld [vmem:[%s2 + $0x18] sm:$0xff]
          %vm501 = vcmask 31744
          %v503 = vsel %vm501, %v497, 0
          %v506 = vsel %vm501, %v498, 0
          %v509 = vsel %vm501, %v499, 0
          %v512 = vsel %vm501, %v500, 0
          %vm514 = vcmask 1043456
          %v516 = vsel %vm514, %v496, 0
          %518 = vmatprep.subr.mxu0 0.0
          %519 = vmatpush1.msra.mxu0 %v516
          %520 = vmatprep.subr.mxu0 0.0
          %521 = vmatpush1.msra.mxu0 0.0
          %522 = vmatprep.subr.mxu0 0.0
          %523 = vmatpush1.msra.mxu0 0.0
          %524 = vmatprep.subr.mxu0 0.0
          %525 = vmatpush1.msra.mxu0 0.0
          %526 = vmatprep.subr.mxu0 0.0
          %527 = vmatpush1.msra.mxu0 0.0
          %528 = vmatprep.subr.mxu0 0.0
          %529 = vmatpush1.msra.mxu0 0.0
          %530 = vmatprep.subr.mxu0 0.0
          %531 = vmatpush1.msra.mxu0 0.0
          %532 = vmatprep.subr.mxu0 0.0
          %533 = vmatpush1.msra.mxu0 0.0
          %534 = vmatprep.subr.mxu0 0.0
          %535 = vmatpush1.msra.mxu0 0.0
          %536 = vmatprep.subr.mxu0 0.0
          %537 = vmatpush1.msra.mxu0 0.0
          %538 = vmatprep.subr.mxu0 0.0
          %539 = vmatpush1.msra.mxu0 0.0
          %540 = vmatprep.subr.mxu0 0.0
          %541 = vmatpush1.msra.mxu0 0.0
          %542 = vmatprep.subr.mxu0 0.0
          %543 = vmatpush1.msra.mxu0 0.0
          %544 = vmatprep.subr.mxu0 0.0
          %545 = vmatpush1.msra.mxu0 0.0
          %546 = vmatprep.subr.mxu0 0.0
          %547 = vmatpush1.msra.mxu0 0.0
          %548 = vmatprep.subr.mxu0 0.0
          %549 = vmatpush1.msra.mxu0 0.0
          %550 = vmatprep.subr.mxu0 0.0
          %551 = vmatpush1.msra.mxu0 0.0
          %552 = vmatprep.subr.mxu0 0.0
          %553 = vmatpush1.msra.mxu0 0.0
          %554 = vmatprep.subr.mxu0 0.0
          %555 = vmatpush1.msra.mxu0 0.0
          %556 = vmatprep.subr.mxu0 0.0
          %557 = vmatpush1.msra.mxu0 0.0
          %558 = vmatprep.subr.mxu0 0.0
          %559 = vmatpush1.msra.mxu0 0.0
          %560 = vmatprep.subr.mxu0 0.0
          %561 = vmatpush1.msra.mxu0 0.0
          %562 = vmatprep.subr.mxu0 0.0
          %563 = vmatpush1.msra.mxu0 0.0
          %564 = vmatprep.subr.mxu0 0.0
          %565 = vmatpush1.msra.mxu0 0.0
          %566 = vmatprep.subr.mxu0 0.0
          %567 = vmatpush1.msra.mxu0 0.0
          %568 = vmatprep.subr.mxu0 0.0
          %569 = vmatpush1.msra.mxu0 0.0
          %570 = vmatprep.subr.mxu0 0.0
          %571 = vmatpush1.msra.mxu0 0.0
          %572 = vmatprep.subr.mxu0 0.0
          %573 = vmatpush1.msra.mxu0 0.0
          %574 = vmatprep.subr.mxu0 0.0
          %575 = vmatpush1.msra.mxu0 0.0
          %576 = vmatprep.subr.mxu0 0.0
          %577 = vmatpush1.msra.mxu0 0.0
          %578 = vmatprep.subr.mxu0 0.0
          %579 = vmatpush1.msra.mxu0 0.0
          %580 = vmatprep.subr.mxu0 0.0
          %581 = vmatpush1.msra.mxu0 0.0
          %582 = vmatprep.mubr.f32.mxu0 0.0
          %583 = vmatmul.mubr.f32.gmra.mrb[0].mxu0 %v503
          %v584 = vpop.f32.mrb[0].mxu0
          %v585 = vadd.f32 0.0, %v584
          %v586 = vpop.f32.mrb[0].mxu0
          %587 = vmatprep.mubr.f32.mxu0 0.0
          %588 = vmatmul.mubr.f32.gmra.mrb[0].mxu0 %v506
          %v589 = vpop.f32.mrb[0].mxu0
          %v590 = vadd.f32 0.0, %v589
          %v591 = vpop.f32.mrb[0].mxu0
          %592 = vmatprep.mubr.f32.mxu0 0.0
          %593 = vmatmul.mubr.f32.gmra.mrb[0].mxu0 %v509
          %v594 = vpop.f32.mrb[0].mxu0
          %v595 = vadd.f32 0.0, %v594
          %v596 = vpop.f32.mrb[0].mxu0
          %597 = vmatprep.mubr.f32.mxu0 0.0
          %598 = vmatmul.mubr.f32.gmra.mrb[0].mxu0 %v512
          %v599 = vpop.f32.mrb[0].mxu0
          %v600 = vadd.f32 0.0, %v599
          %v601 = vpop.f32.mrb[0].mxu0
          %602 = vdwg.mxu0
          %v603 = vmax.f32 %v585, 0.0
          %v604 = vmax.f32 %v590, 0.0
          %v605 = vmax.f32 %v595, 0.0
          %v606 = vmax.f32 %v600, 0.0
          %v607 = vld [vmem:[%s3] sm:$0xff]
          %v608 = vld [vmem:[%s3 + $0x8] sm:$0xff]
          %v609 = vld [vmem:[%s3 + $0x10] sm:$0xff]
          %v610 = vld [vmem:[%s3 + $0x18] sm:$0xff]
          %v611 = vld [vmem:[%s4] sm:$0xff]
          %v612 = vld [vmem:[%s4 + $0x8] sm:$0xff]
          %v613 = vld [vmem:[%s4 + $0x10] sm:$0xff]
          %v614 = vld [vmem:[%s4 + $0x18] sm:$0xff]
          %616 = vset.pattern.permute.xlu0 0
          %617 = vperm.xlu0 %616, %v611
          %v618 = vpop.permute.xlu0 %617
          %621 = vset.pattern.permute.xlu0 0
          %622 = vperm.xlu0 %621, %v612
          %v623 = vpop.permute.xlu0 %622
          %626 = vset.pattern.permute.xlu0 0
          %627 = vperm.xlu0 %626, %v613
          %v628 = vpop.permute.xlu0 %627
          %631 = vset.pattern.permute.xlu0 0
          %632 = vperm.xlu0 %631, %v614
          %v633 = vpop.permute.xlu0 %632
          %vm635 = vcmask 261120
          %v637 = vsel %vm635, %v607, 0
          %v640 = vsel %vm635, %v608, 0
          %v643 = vsel %vm635, %v609, 0
          %v646 = vsel %vm635, %v610, 0
          %648 = vmatprep.subr.mxu0 0.0
          %649 = vmatpush1.msra.mxu0 %v603
          %650 = vmatprep.subr.mxu0 0.0
          %651 = vmatpush1.msra.mxu0 %v604
          %652 = vmatprep.subr.mxu0 0.0
          %653 = vmatpush1.msra.mxu0 %v605
          %654 = vmatprep.subr.mxu0 0.0
          %655 = vmatpush1.msra.mxu0 %v606
          %656 = vmatprep.subr.mxu0 0.0
          %657 = vmatpush1.msra.mxu0 0.0
          %658 = vmatprep.subr.mxu0 0.0
          %659 = vmatpush1.msra.mxu0 0.0
          %660 = vmatprep.subr.mxu0 0.0
          %661 = vmatpush1.msra.mxu0 0.0
          %662 = vmatprep.subr.mxu0 0.0
          %663 = vmatpush1.msra.mxu0 0.0
          %664 = vmatprep.subr.mxu0 0.0
          %665 = vmatpush1.msra.mxu0 0.0
          %666 = vmatprep.subr.mxu0 0.0
          %667 = vmatpush1.msra.mxu0 0.0
          %668 = vmatprep.subr.mxu0 0.0
          %669 = vmatpush1.msra.mxu0 0.0
          %670 = vmatprep.subr.mxu0 0.0
          %671 = vmatpush1.msra.mxu0 0.0
          %672 = vmatprep.subr.mxu0 0.0
          %673 = vmatpush1.msra.mxu0 0.0
          %674 = vmatprep.subr.mxu0 0.0
          %675 = vmatpush1.msra.mxu0 0.0
          %676 = vmatprep.subr.mxu0 0.0
          %677 = vmatpush1.msra.mxu0 0.0
          %678 = vmatprep.subr.mxu0 0.0
          %679 = vmatpush1.msra.mxu0 0.0
          %680 = vmatprep.subr.mxu0 0.0
          %681 = vmatpush1.msra.mxu0 0.0
          %682 = vmatprep.subr.mxu0 0.0
          %683 = vmatpush1.msra.mxu0 0.0
          %684 = vmatprep.subr.mxu0 0.0
          %685 = vmatpush1.msra.mxu0 0.0
          %686 = vmatprep.subr.mxu0 0.0
          %687 = vmatpush1.msra.mxu0 0.0
          %688 = vmatprep.subr.mxu0 0.0
          %689 = vmatpush1.msra.mxu0 0.0
          %690 = vmatprep.subr.mxu0 0.0
          %691 = vmatpush1.msra.mxu0 0.0
          %692 = vmatprep.subr.mxu0 0.0
          %693 = vmatpush1.msra.mxu0 0.0
          %694 = vmatprep.subr.mxu0 0.0
          %695 = vmatpush1.msra.mxu0 0.0
          %696 = vmatprep.subr.mxu0 0.0
          %697 = vmatpush1.msra.mxu0 0.0
          %698 = vmatprep.subr.mxu0 0.0
          %699 = vmatpush1.msra.mxu0 0.0
          %700 = vmatprep.subr.mxu0 0.0
          %701 = vmatpush1.msra.mxu0 0.0
          %702 = vmatprep.subr.mxu0 0.0
          %703 = vmatpush1.msra.mxu0 0.0
          %704 = vmatprep.subr.mxu0 0.0
          %705 = vmatpush1.msra.mxu0 0.0
          %706 = vmatprep.subr.mxu0 0.0
          %707 = vmatpush1.msra.mxu0 0.0
          %708 = vmatprep.subr.mxu0 0.0
          %709 = vmatpush1.msra.mxu0 0.0
          %710 = vmatprep.subr.mxu0 0.0
          %711 = vmatpush1.msra.mxu0 0.0
          %712 = vmatprep.mubr.f32.mxu0 0.0
          %713 = vmatmul.mubr.f32.gmra.mrb[0].mxu0 %v637
          %v714 = vpop.f32.mrb[0].mxu0
          %v715 = vadd.f32 %v618, %v714
          %v716 = vpop.f32.mrb[0].mxu0
          %717 = vmatprep.mubr.f32.mxu0 0.0
          %718 = vmatmul.mubr.f32.gmra.mrb[0].mxu0 %v640
          %v719 = vpop.f32.mrb[0].mxu0
          %v720 = vadd.f32 %v623, %v719
          %v721 = vpop.f32.mrb[0].mxu0
          %722 = vmatprep.mubr.f32.mxu0 0.0
          %723 = vmatmul.mubr.f32.gmra.mrb[0].mxu0 %v643
          %v724 = vpop.f32.mrb[0].mxu0
          %v725 = vadd.f32 %v628, %v724
          %v726 = vpop.f32.mrb[0].mxu0
          %727 = vmatprep.mubr.f32.mxu0 0.0
          %728 = vmatmul.mubr.f32.gmra.mrb[0].mxu0 %v646
          %v729 = vpop.f32.mrb[0].mxu0
          %v730 = vadd.f32 %v633, %v729
          %v731 = vpop.f32.mrb[0].mxu0
          %732 = vdwg.mxu0
          %v733 = vmax.f32 %v715, 0.0
          %v734 = vmax.f32 %v720, 0.0
          %v735 = vmax.f32 %v725, 0.0
          %v736 = vmax.f32 %v730, 0.0
          %v737 = vsel %vm495, 1, 0
          %vm738 = vcmp.eq.s32.totalorder %v737, 1
          %v739 = vsel %vm738, %v733, -3.4028235e+38
          %v740 = vsel %vm738, %v734, -3.4028235e+38
          %v741 = vsel %vm738, %v735, -3.4028235e+38
          %v742 = vsel %vm738, %v736, -3.4028235e+38
          %743 = vmax.xlane.f32.xlu0 %v739
          %v744 = vpop.xlane.xlu0 %743
          %745 = vmax.xlane.f32.xlu0 %v740
          %v746 = vpop.xlane.xlu0 %745
          %747 = vmax.xlane.f32.xlu0 %v741
          %v748 = vpop.xlane.xlu0 %747
          %749 = vmax.xlane.f32.xlu0 %v742
          %v750 = vpop.xlane.xlu0 %749
          %v751 = vld [vmem:[%s5] sm:$0xff]
          %v752 = vld [vmem:[%s5 + $0x8] sm:$0xff]
          %v753 = vld [vmem:[%s5 + $0x10] sm:$0xff]
          %v754 = vld [vmem:[%s5 + $0x18] sm:$0xff]
          %v755 = vld [vmem:[%s5 + $0x20] sm:$0xff]
          %v756 = vld [vmem:[%s5 + $0x28] sm:$0xff]
          %v757 = vld [vmem:[%s5 + $0x30] sm:$0xff]
          %v758 = vld [vmem:[%s5 + $0x38] sm:$0xff]
          %v759 = vld [vmem:[%s5 + $0x40] sm:$0xff]
          %v760 = vld [vmem:[%s5 + $0x48] sm:$0xff]
          %v761 = vld [vmem:[%s5 + $0x50] sm:$0xff]
          %v762 = vld [vmem:[%s5 + $0x58] sm:$0xff]
          %v763 = vld [vmem:[%s5 + $0x60] sm:$0xff]
          %v764 = vld [vmem:[%s5 + $0x68] sm:$0xff]
          %v765 = vld [vmem:[%s5 + $0x70] sm:$0xff]
          %v766 = vld [vmem:[%s5 + $0x78] sm:$0xff]
          %v767 = vmul.f32 %v744, %v751
          %v768 = vmul.f32 %v744, %v752
          %v769 = vmul.f32 %v744, %v753
          %v770 = vmul.f32 %v744, %v754
          %v771 = vmul.f32 %v746, %v755
          %v772 = vmul.f32 %v746, %v756
          %v773 = vmul.f32 %v746, %v757
          %v774 = vmul.f32 %v746, %v758
          %v775 = vmul.f32 %v748, %v759
          %v776 = vmul.f32 %v748, %v760
          %v777 = vmul.f32 %v748, %v761
          %v778 = vmul.f32 %v748, %v762
          %v779 = vmul.f32 %v750, %v763
          %v780 = vmul.f32 %v750, %v764
          %v781 = vmul.f32 %v750, %v765
          %v782 = vmul.f32 %v750, %v766
          %v783 = vadd.f32 %v767, %v771
          %v784 = vadd.f32 %v783, %v775
          %v785 = vadd.f32 %v784, %v779
          %v786 = vrot.slane %v785, 4
          %v787 = vadd.f32 %v785, %v786
          %v788 = vrot.slane %v787, 2
          %v789 = vadd.f32 %v787, %v788
          %v790 = vrot.slane %v789, 1
          %v791 = vadd.f32 %v789, %v790
          %v792 = vadd.f32 %v768, %v772
          %v793 = vadd.f32 %v792, %v776
          %v794 = vadd.f32 %v793, %v780
          %v795 = vrot.slane %v794, 4
          %v796 = vadd.f32 %v794, %v795
          %v797 = vrot.slane %v796, 2
          %v798 = vadd.f32 %v796, %v797
          %v799 = vrot.slane %v798, 1
          %v800 = vadd.f32 %v798, %v799
          %v801 = vadd.f32 %v769, %v773
          %v802 = vadd.f32 %v801, %v777
          %v803 = vadd.f32 %v802, %v781
          %v804 = vrot.slane %v803, 4
          %v805 = vadd.f32 %v803, %v804
          %v806 = vrot.slane %v805, 2
          %v807 = vadd.f32 %v805, %v806
          %v808 = vrot.slane %v807, 1
          %v809 = vadd.f32 %v807, %v808
          %v810 = vadd.f32 %v770, %v774
          %v811 = vadd.f32 %v810, %v778
          %v812 = vadd.f32 %v811, %v782
          %v813 = vrot.slane %v812, 4
          %v814 = vadd.f32 %v812, %v813
          %v815 = vrot.slane %v814, 2
          %v816 = vadd.f32 %v814, %v815
          %v817 = vrot.slane %v816, 1
          %v818 = vadd.f32 %v816, %v817
          %v823 = vcombine.low %v791, %v800
          %v824 = vcombine.low %v809, %v818
          %v826 = vunpack.c.l.s4 1966171168
          %v827 = vunpack.c.0.s8 %v826
          %v828 = vlaneseq
          %v829 = vshrl.u32 %v828, 7
          %v830 = vsub.s32 %v827, %v829
          %v831 = vrot.slane %v823, %v830
          %v833 = vunpack.c.l.s4 1966171168
          %v834 = vunpack.c.0.s8 %v833
          %v835 = vlaneseq
          %v836 = vshrl.u32 %v835, 7
          %v837 = vsub.s32 %v834, %v836
          %v838 = vrot.slane %v824, %v837
          %v839 = vcombine.low %v831, %v838
          %v841 = vunpack.c.l.s4 1966171168
          %v842 = vunpack.c.0.s8 %v841
          %v843 = vlaneseq
          %v844 = vshrl.u32 %v843, 7
          %v845 = vsub.s32 %v842, %v844
          %v846 = vrot.slane %v839, %v845
          %v848 = vlaneseq
          %vm849 = vcmp.ge.s32.totalorder %v848, 0
          %vm850 = vcmp.lt.s32.totalorder %v848, 512
          %vm851 = vmand %vm849, %vm850
          %852 = vst.msk [vmem:[%s488] sm:$0xf] %vm851, %v846
          %v853 = vld [vmem:[%s7] sm:$0xff]
          %v854 = vld [vmem:[%s7 + $0x8] sm:$0xff]
          %v855 = vld [vmem:[%s7 + $0x10] sm:$0xff]
          %v856 = vld [vmem:[%s7 + $0x18] sm:$0xff]
          %v858 = vsel %vm635, %v853, 0
          %v861 = vsel %vm635, %v854, 0
          %v864 = vsel %vm635, %v855, 0
          %v867 = vsel %vm635, %v856, 0
          %869 = vmatprep.subr.mxu0 0.0
          %870 = vmatpush1.msra.mxu0 %v744
          %871 = vmatprep.subr.mxu0 0.0
          %872 = vmatpush1.msra.mxu0 %v746
          %873 = vmatprep.subr.mxu0 0.0
          %874 = vmatpush1.msra.mxu0 %v748
          %875 = vmatprep.subr.mxu0 0.0
          %876 = vmatpush1.msra.mxu0 %v750
          %877 = vmatprep.subr.mxu0 0.0
          %878 = vmatpush1.msra.mxu0 0.0
          %879 = vmatprep.subr.mxu0 0.0
          %880 = vmatpush1.msra.mxu0 0.0
          %881 = vmatprep.subr.mxu0 0.0
          %882 = vmatpush1.msra.mxu0 0.0
          %883 = vmatprep.subr.mxu0 0.0
          %884 = vmatpush1.msra.mxu0 0.0
          %885 = vmatprep.subr.mxu0 0.0
          %886 = vmatpush1.msra.mxu0 0.0
          %887 = vmatprep.subr.mxu0 0.0
          %888 = vmatpush1.msra.mxu0 0.0
          %889 = vmatprep.subr.mxu0 0.0
          %890 = vmatpush1.msra.mxu0 0.0
          %891 = vmatprep.subr.mxu0 0.0
          %892 = vmatpush1.msra.mxu0 0.0
          %893 = vmatprep.subr.mxu0 0.0
          %894 = vmatpush1.msra.mxu0 0.0
          %895 = vmatprep.subr.mxu0 0.0
          %896 = vmatpush1.msra.mxu0 0.0
          %897 = vmatprep.subr.mxu0 0.0
          %898 = vmatpush1.msra.mxu0 0.0
          %899 = vmatprep.subr.mxu0 0.0
          %900 = vmatpush1.msra.mxu0 0.0
          %901 = vmatprep.subr.mxu0 0.0
          %902 = vmatpush1.msra.mxu0 0.0
          %903 = vmatprep.subr.mxu0 0.0
          %904 = vmatpush1.msra.mxu0 0.0
          %905 = vmatprep.subr.mxu0 0.0
          %906 = vmatpush1.msra.mxu0 0.0
          %907 = vmatprep.subr.mxu0 0.0
          %908 = vmatpush1.msra.mxu0 0.0
          %909 = vmatprep.subr.mxu0 0.0
          %910 = vmatpush1.msra.mxu0 0.0
          %911 = vmatprep.subr.mxu0 0.0
          %912 = vmatpush1.msra.mxu0 0.0
          %913 = vmatprep.subr.mxu0 0.0
          %914 = vmatpush1.msra.mxu0 0.0
          %915 = vmatprep.subr.mxu0 0.0
          %916 = vmatpush1.msra.mxu0 0.0
          %917 = vmatprep.subr.mxu0 0.0
          %918 = vmatpush1.msra.mxu0 0.0
          %919 = vmatprep.subr.mxu0 0.0
          %920 = vmatpush1.msra.mxu0 0.0
          %921 = vmatprep.subr.mxu0 0.0
          %922 = vmatpush1.msra.mxu0 0.0
          %923 = vmatprep.subr.mxu0 0.0
          %924 = vmatpush1.msra.mxu0 0.0
          %925 = vmatprep.subr.mxu0 0.0
          %926 = vmatpush1.msra.mxu0 0.0
          %927 = vmatprep.subr.mxu0 0.0
          %928 = vmatpush1.msra.mxu0 0.0
          %929 = vmatprep.subr.mxu0 0.0
          %930 = vmatpush1.msra.mxu0 0.0
          %931 = vmatprep.subr.mxu0 0.0
          %932 = vmatpush1.msra.mxu0 0.0
          %933 = vmatprep.mubr.f32.mxu0 0.0
          %934 = vmatmul.mubr.f32.gmra.mrb[0].mxu0 %v858
          %v935 = vpop.f32.mrb[0].mxu0
          %v936 = vadd.f32 0.0, %v935
          %v937 = vpop.f32.mrb[0].mxu0
          %938 = vmatprep.mubr.f32.mxu0 0.0
          %939 = vmatmul.mubr.f32.gmra.mrb[0].mxu0 %v861
          %v940 = vpop.f32.mrb[0].mxu0
          %v941 = vadd.f32 0.0, %v940
          %v942 = vpop.f32.mrb[0].mxu0
          %943 = vmatprep.mubr.f32.mxu0 0.0
          %944 = vmatmul.mubr.f32.gmra.mrb[0].mxu0 %v864
          %v945 = vpop.f32.mrb[0].mxu0
          %v946 = vadd.f32 0.0, %v945
          %v947 = vpop.f32.mrb[0].mxu0
          %948 = vmatprep.mubr.f32.mxu0 0.0
          %949 = vmatmul.mubr.f32.gmra.mrb[0].mxu0 %v867
          %v950 = vpop.f32.mrb[0].mxu0
          %v951 = vadd.f32 0.0, %v950
          %v952 = vpop.f32.mrb[0].mxu0
          %953 = vdwg.mxu0
          %vm954 = vcmask 7168
          %955 = vst.msk [vmem:[#allocation2] sm:$0xff] %vm954, %v936
          %956 = vst.msk [vmem:[#allocation2 + $0x8] sm:$0xff] %vm954, %v941
          %957 = vst.msk [vmem:[#allocation2 + $0x10] sm:$0xff] %vm954, %v946
          %958 = vst.msk [vmem:[#allocation2 + $0x18] sm:$0xff] %vm954, %v951
        $region72: #{occupancy_network_forward.1} parent=67 // pred_fallthru
          _
        %s959 = sld [smem:[#allocation3]]
        %v960 = vld [vmem:[%s480] sm:$0xf]
        %v961 = vld [vmem:[%s6] sm:$0xff]
        %v962 = vld [vmem:[%s6 + $0x8] sm:$0xff]
        %v963 = vld [vmem:[%s6 + $0x10] sm:$0xff]
        %v964 = vld [vmem:[%s6 + $0x18] sm:$0xff]
        %v965 = vld [vmem:[#allocation2] sm:$0xff]
        %v966 = vld [vmem:[#allocation2 + $0x8] sm:$0xff]
        %v967 = vld [vmem:[#allocation2 + $0x10] sm:$0xff]
        %v968 = vld [vmem:[#allocation2 + $0x18] sm:$0xff]
        %970 = vset.pattern.permute.xlu0 0
        %971 = vperm.xlu0 %970, %v965
        %v972 = vpop.permute.xlu0 %971
        %975 = vset.pattern.permute.xlu0 0
        %976 = vperm.xlu0 %975, %v966
        %v977 = vpop.permute.xlu0 %976
        %980 = vset.pattern.permute.xlu0 0
        %981 = vperm.xlu0 %980, %v967
        %v982 = vpop.permute.xlu0 %981
        %985 = vset.pattern.permute.xlu0 0
        %986 = vperm.xlu0 %985, %v968
        %v987 = vpop.permute.xlu0 %986
        %vm989 = vcmask 31744
        %v991 = vsel %vm989, %v961, 0
        %v994 = vsel %vm989, %v962, 0
        %v997 = vsel %vm989, %v963, 0
        %v1000 = vsel %vm989, %v964, 0
        %vm1002 = vcmask 1043456
        %v1004 = vsel %vm1002, %v960, 0
        %1006 = vmatprep.subr.mxu0 0.0
        %1007 = vmatpush1.msra.mxu0 %v1004
        %1008 = vmatprep.subr.mxu0 0.0
        %1009 = vmatpush1.msra.mxu0 0.0
        %1010 = vmatprep.subr.mxu0 0.0
        %1011 = vmatpush1.msra.mxu0 0.0
        %1012 = vmatprep.subr.mxu0 0.0
        %1013 = vmatpush1.msra.mxu0 0.0
        %1014 = vmatprep.subr.mxu0 0.0
        %1015 = vmatpush1.msra.mxu0 0.0
        %1016 = vmatprep.subr.mxu0 0.0
        %1017 = vmatpush1.msra.mxu0 0.0
        %1018 = vmatprep.subr.mxu0 0.0
        %1019 = vmatpush1.msra.mxu0 0.0
        %1020 = vmatprep.subr.mxu0 0.0
        %1021 = vmatpush1.msra.mxu0 0.0
        %1022 = vmatprep.subr.mxu0 0.0
        %1023 = vmatpush1.msra.mxu0 0.0
        %1024 = vmatprep.subr.mxu0 0.0
        %1025 = vmatpush1.msra.mxu0 0.0
        %1026 = vmatprep.subr.mxu0 0.0
        %1027 = vmatpush1.msra.mxu0 0.0
        %1028 = vmatprep.subr.mxu0 0.0
        %1029 = vmatpush1.msra.mxu0 0.0
        %1030 = vmatprep.subr.mxu0 0.0
        %1031 = vmatpush1.msra.mxu0 0.0
        %1032 = vmatprep.subr.mxu0 0.0
        %1033 = vmatpush1.msra.mxu0 0.0
        %1034 = vmatprep.subr.mxu0 0.0
        %1035 = vmatpush1.msra.mxu0 0.0
        %1036 = vmatprep.subr.mxu0 0.0
        %1037 = vmatpush1.msra.mxu0 0.0
        %1038 = vmatprep.subr.mxu0 0.0
        %1039 = vmatpush1.msra.mxu0 0.0
        %1040 = vmatprep.subr.mxu0 0.0
        %1041 = vmatpush1.msra.mxu0 0.0
        %1042 = vmatprep.subr.mxu0 0.0
        %1043 = vmatpush1.msra.mxu0 0.0
        %1044 = vmatprep.subr.mxu0 0.0
        %1045 = vmatpush1.msra.mxu0 0.0
        %1046 = vmatprep.subr.mxu0 0.0
        %1047 = vmatpush1.msra.mxu0 0.0
        %1048 = vmatprep.subr.mxu0 0.0
        %1049 = vmatpush1.msra.mxu0 0.0
        %1050 = vmatprep.subr.mxu0 0.0
        %1051 = vmatpush1.msra.mxu0 0.0
        %1052 = vmatprep.subr.mxu0 0.0
        %1053 = vmatpush1.msra.mxu0 0.0
        %1054 = vmatprep.subr.mxu0 0.0
        %1055 = vmatpush1.msra.mxu0 0.0
        %1056 = vmatprep.subr.mxu0 0.0
        %1057 = vmatpush1.msra.mxu0 0.0
        %1058 = vmatprep.subr.mxu0 0.0
        %1059 = vmatpush1.msra.mxu0 0.0
        %1060 = vmatprep.subr.mxu0 0.0
        %1061 = vmatpush1.msra.mxu0 0.0
        %1062 = vmatprep.subr.mxu0 0.0
        %1063 = vmatpush1.msra.mxu0 0.0
        %1064 = vmatprep.subr.mxu0 0.0
        %1065 = vmatpush1.msra.mxu0 0.0
        %1066 = vmatprep.subr.mxu0 0.0
        %1067 = vmatpush1.msra.mxu0 0.0
        %1068 = vmatprep.subr.mxu0 0.0
        %1069 = vmatpush1.msra.mxu0 0.0
        %1070 = vmatprep.mubr.f32.mxu0 0.0
        %1071 = vmatmul.mubr.f32.gmra.mrb[0].mxu0 %v991
        %v1072 = vpop.f32.mrb[0].mxu0
        %v1073 = vadd.f32 %v972, %v1072
        %v1074 = vpop.f32.mrb[0].mxu0
        %1075 = vmatprep.mubr.f32.mxu0 0.0
        %1076 = vmatmul.mubr.f32.gmra.mrb[0].mxu0 %v994
        %v1077 = vpop.f32.mrb[0].mxu0
        %v1078 = vadd.f32 %v977, %v1077
        %v1079 = vpop.f32.mrb[0].mxu0
        %1080 = vmatprep.mubr.f32.mxu0 0.0
        %1081 = vmatmul.mubr.f32.gmra.mrb[0].mxu0 %v997
        %v1082 = vpop.f32.mrb[0].mxu0
        %v1083 = vadd.f32 %v982, %v1082
        %v1084 = vpop.f32.mrb[0].mxu0
        %1085 = vmatprep.mubr.f32.mxu0 0.0
        %1086 = vmatmul.mubr.f32.gmra.mrb[0].mxu0 %v1000
        %v1087 = vpop.f32.mrb[0].mxu0
        %v1088 = vadd.f32 %v987, %v1087
        %v1089 = vpop.f32.mrb[0].mxu0
        %1090 = vdwg.mxu0
        %v1091 = vmax.f32 %v1073, 0.0
        %v1092 = vmax.f32 %v1078, 0.0
        %v1093 = vmax.f32 %v1083, 0.0
        %v1094 = vmax.f32 %v1088, 0.0
        %v1095 = vld [vmem:[%s8] sm:$0xff]
        %v1096 = vld [vmem:[%s8 + $0x8] sm:$0xff]
        %v1097 = vld [vmem:[%s8 + $0x10] sm:$0xff]
        %v1098 = vld [vmem:[%s8 + $0x18] sm:$0xff]
        %v1099 = vld [vmem:[%s9] sm:$0xff]
        %v1100 = vld [vmem:[%s9 + $0x8] sm:$0xff]
        %v1101 = vld [vmem:[%s9 + $0x10] sm:$0xff]
        %v1102 = vld [vmem:[%s9 + $0x18] sm:$0xff]
        %1104 = vset.pattern.permute.xlu0 0
        %1105 = vperm.xlu0 %1104, %v1099
        %v1106 = vpop.permute.xlu0 %1105
        %1109 = vset.pattern.permute.xlu0 0
        %1110 = vperm.xlu0 %1109, %v1100
        %v1111 = vpop.permute.xlu0 %1110
        %1114 = vset.pattern.permute.xlu0 0
        %1115 = vperm.xlu0 %1114, %v1101
        %v1116 = vpop.permute.xlu0 %1115
        %1119 = vset.pattern.permute.xlu0 0
        %1120 = vperm.xlu0 %1119, %v1102
        %v1121 = vpop.permute.xlu0 %1120
        %vm1123 = vcmask 261120
        %v1125 = vsel %vm1123, %v1095, 0
        %v1128 = vsel %vm1123, %v1096, 0
        %v1131 = vsel %vm1123, %v1097, 0
        %v1134 = vsel %vm1123, %v1098, 0
        %1136 = vmatprep.subr.mxu0 0.0
        %1137 = vmatpush1.msra.mxu0 %v1091
        %1138 = vmatprep.subr.mxu0 0.0
        %1139 = vmatpush1.msra.mxu0 %v1092
        %1140 = vmatprep.subr.mxu0 0.0
        %1141 = vmatpush1.msra.mxu0 %v1093
        %1142 = vmatprep.subr.mxu0 0.0
        %1143 = vmatpush1.msra.mxu0 %v1094
        %1144 = vmatprep.subr.mxu0 0.0
        %1145 = vmatpush1.msra.mxu0 0.0
        %1146 = vmatprep.subr.mxu0 0.0
        %1147 = vmatpush1.msra.mxu0 0.0
        %1148 = vmatprep.subr.mxu0 0.0
        %1149 = vmatpush1.msra.mxu0 0.0
        %1150 = vmatprep.subr.mxu0 0.0
        %1151 = vmatpush1.msra.mxu0 0.0
        %1152 = vmatprep.subr.mxu0 0.0
        %1153 = vmatpush1.msra.mxu0 0.0
        %1154 = vmatprep.subr.mxu0 0.0
        %1155 = vmatpush1.msra.mxu0 0.0
        %1156 = vmatprep.subr.mxu0 0.0
        %1157 = vmatpush1.msra.mxu0 0.0
        %1158 = vmatprep.subr.mxu0 0.0
        %1159 = vmatpush1.msra.mxu0 0.0
        %1160 = vmatprep.subr.mxu0 0.0
        %1161 = vmatpush1.msra.mxu0 0.0
        %1162 = vmatprep.subr.mxu0 0.0
        %1163 = vmatpush1.msra.mxu0 0.0
        %1164 = vmatprep.subr.mxu0 0.0
        %1165 = vmatpush1.msra.mxu0 0.0
        %1166 = vmatprep.subr.mxu0 0.0
        %1167 = vmatpush1.msra.mxu0 0.0
        %1168 = vmatprep.subr.mxu0 0.0
        %1169 = vmatpush1.msra.mxu0 0.0
        %1170 = vmatprep.subr.mxu0 0.0
        %1171 = vmatpush1.msra.mxu0 0.0
        %1172 = vmatprep.subr.mxu0 0.0
        %1173 = vmatpush1.msra.mxu0 0.0
        %1174 = vmatprep.subr.mxu0 0.0
        %1175 = vmatpush1.msra.mxu0 0.0
        %1176 = vmatprep.subr.mxu0 0.0
        %1177 = vmatpush1.msra.mxu0 0.0
        %1178 = vmatprep.subr.mxu0 0.0
        %1179 = vmatpush1.msra.mxu0 0.0
        %1180 = vmatprep.subr.mxu0 0.0
        %1181 = vmatpush1.msra.mxu0 0.0
        %1182 = vmatprep.subr.mxu0 0.0
        %1183 = vmatpush1.msra.mxu0 0.0
        %1184 = vmatprep.subr.mxu0 0.0
        %1185 = vmatpush1.msra.mxu0 0.0
        %1186 = vmatprep.subr.mxu0 0.0
        %1187 = vmatpush1.msra.mxu0 0.0
        %1188 = vmatprep.subr.mxu0 0.0
        %1189 = vmatpush1.msra.mxu0 0.0
        %1190 = vmatprep.subr.mxu0 0.0
        %1191 = vmatpush1.msra.mxu0 0.0
        %1192 = vmatprep.subr.mxu0 0.0
        %1193 = vmatpush1.msra.mxu0 0.0
        %1194 = vmatprep.subr.mxu0 0.0
        %1195 = vmatpush1.msra.mxu0 0.0
        %1196 = vmatprep.subr.mxu0 0.0
        %1197 = vmatpush1.msra.mxu0 0.0
        %1198 = vmatprep.subr.mxu0 0.0
        %1199 = vmatpush1.msra.mxu0 0.0
        %1200 = vmatprep.mubr.f32.mxu0 0.0
        %1201 = vmatmul.mubr.f32.gmra.mrb[0].mxu0 %v1125
        %v1202 = vpop.f32.mrb[0].mxu0
        %v1203 = vadd.f32 %v1106, %v1202
        %v1204 = vpop.f32.mrb[0].mxu0
        %1205 = vmatprep.mubr.f32.mxu0 0.0
        %1206 = vmatmul.mubr.f32.gmra.mrb[0].mxu0 %v1128
        %v1207 = vpop.f32.mrb[0].mxu0
        %v1208 = vadd.f32 %v1111, %v1207
        %v1209 = vpop.f32.mrb[0].mxu0
        %1210 = vmatprep.mubr.f32.mxu0 0.0
        %1211 = vmatmul.mubr.f32.gmra.mrb[0].mxu0 %v1131
        %v1212 = vpop.f32.mrb[0].mxu0
        %v1213 = vadd.f32 %v1116, %v1212
        %v1214 = vpop.f32.mrb[0].mxu0
        %1215 = vmatprep.mubr.f32.mxu0 0.0
        %1216 = vmatmul.mubr.f32.gmra.mrb[0].mxu0 %v1134
        %v1217 = vpop.f32.mrb[0].mxu0
        %v1218 = vadd.f32 %v1121, %v1217
        %v1219 = vpop.f32.mrb[0].mxu0
        %1220 = vdwg.mxu0
        %v1221 = vmax.f32 %v1203, 0.0
        %v1222 = vmax.f32 %v1208, 0.0
        %v1223 = vmax.f32 %v1213, 0.0
        %v1224 = vmax.f32 %v1218, 0.0
        %v1225 = vld [vmem:[%s10] sm:$0xff]
        %v1226 = vld [vmem:[%s10 + $0x8] sm:$0xff]
        %v1227 = vld [vmem:[%s10 + $0x10] sm:$0xff]
        %v1228 = vld [vmem:[%s10 + $0x18] sm:$0xff]
        %1230 = vset.pattern.permute.xlu0 0
        %1231 = vperm.xlu0 %1230, %v1225
        %v1232 = vpop.permute.xlu0 %1231
        %1235 = vset.pattern.permute.xlu0 0
        %1236 = vperm.xlu0 %1235, %v1226
        %v1237 = vpop.permute.xlu0 %1236
        %1240 = vset.pattern.permute.xlu0 0
        %1241 = vperm.xlu0 %1240, %v1227
        %v1242 = vpop.permute.xlu0 %1241
        %1245 = vset.pattern.permute.xlu0 0
        %1246 = vperm.xlu0 %1245, %v1228
        %v1247 = vpop.permute.xlu0 %1246
        %v1249 = vmul.f32 %v1232, %v1221
        %v1250 = vmul.f32 %v1237, %v1222
        %v1251 = vmul.f32 %v1242, %v1223
        %v1252 = vmul.f32 %v1247, %v1224
        %v1253 = vadd.f32 %v1249, %v1250
        %v1254 = vadd.f32 %v1253, %v1251
        %v1255 = vadd.f32 %v1254, %v1252
        %v1256 = vrot.slane %v1255, 4
        %v1257 = vadd.f32 %v1255, %v1256
        %v1258 = vrot.slane %v1257, 2
        %v1259 = vadd.f32 %v1257, %v1258
        %v1260 = vrot.slane %v1259, 1
        %v1261 = vadd.f32 %v1259, %v1260
        %v1262 = vstv %s959
        %v1263 = vadd.f32 %v1261, %v1262
        %1264 = vst [vmem:[%s467] sm:$0x1] %v1263
        %s1265 = sand.u32 %s315, 1
        %s1266 = scalar_lea.sflag [#allocation5], %s1265
        %s1267 = sand.u32 %s315, 1
        %s1268 = scalar_lea.vmem [#allocation4], %s1267
        %p1269 = scmp.lt.s32.totalorder %s33, 1
        %s1270 = scalar_select %p1269, %s33, 1
        %s1271 = smul.addr %s1270, 4
        %s1272 = scalar_lea.vmem %s13, %s1271
        // Predicated region
        $region73: #{occupancy_network_forward.1} parent=67 // pred_check
          %p1273 = pneg %p325
        $region74: #{occupancy_network_forward.1} parent=67 // pred_check_branch
          %1275 = sbr.rel (%p1273) target = $region76
        $region75: #{occupancy_network_forward.1} parent=67 // pred_region
          %s1277 = ssub.s32 16, 16
          %1278 = vsyncadd %s1266, %s1277
          %s1279 = sadd.s32 %s34, %s33
          %s1280 = smul.addr %s1279, 16
          %s1281 = scalar_lea.hbm %s12, %s1280
          %s1283 = sshll.u32 %s1268, 4
          %s1284 = int_to_ptr.vmem [resolvable:$true] %s1283
          %1286 = dma.vmem_to_hbm [thread:$0]  %s1284, 16, %s1281, %s1266
        $region76: #{occupancy_network_forward.1} parent=67 // pred_fallthru
          _
        // Predicated region
        $region77: #{occupancy_network_forward.1} parent=67 // pred_check
          %p1287 = pneg %p351
        $region78: #{occupancy_network_forward.1} parent=67 // pred_check_branch
          %1289 = sbr.rel (%p1287) target = $region80
        $region79: #{occupancy_network_forward.1} parent=67 // pred_region
          _
        $region80: #{occupancy_network_forward.1} parent=67 // pred_fallthru
          _
      $region68: #{occupancy_network_forward.1} parent=5 // pred_fallthru
        _
      %p1290 = scmp.le.s32.totalorder 2, %s24
      // Predicated region
      $region81: #{occupancy_network_forward.1} parent=5 // pred_check
        %p1291 = pneg %p1290
      $region82: #{occupancy_network_forward.1} parent=5 // pred_check_branch
        %1293 = sbr.rel (%p1291) target = $region84
      $region83: #{occupancy_network_forward.1} parent=5 // pred_region
        %s1294 = ssub.s32 %s24, 2
        // Predicated region
        $region85: #{occupancy_network_forward.1} parent=83 // pred_check
          %p1295 = pneg %p331
        $region86: #{occupancy_network_forward.1} parent=83 // pred_check_branch
          %1297 = sbr.rel (%p1295) target = $region88
        $region87: #{occupancy_network_forward.1} parent=83 // pred_region
          %s1298 = sand.u32 %s316, 1
          %s1299 = scalar_lea.sflag [#allocation5], %s1298
          %s1300 = sand.u32 %s316, 1
          %s1301 = scalar_lea.vmem [#allocation4], %s1300
          %1302 = dma.done %s1299, 16
        $region88: #{occupancy_network_forward.1} parent=83 // pred_fallthru
          _
        // Predicated region
        $region89: #{occupancy_network_forward.1} parent=83 // pred_check
          %p1303 = pneg %p357
        $region90: #{occupancy_network_forward.1} parent=83 // pred_check_branch
          %1305 = sbr.rel (%p1303) target = $region92
        $region91: #{occupancy_network_forward.1} parent=83 // pred_region
          %p1306 = scmp.lt.s32.totalorder %s35, 1
          %s1307 = scalar_select %p1306, %s35, 1
          %s1308 = smul.addr %s1307, 4
          %s1309 = scalar_lea.vmem %s13, %s1308
        $region92: #{occupancy_network_forward.1} parent=83 // pred_fallthru
          _
      $region84: #{occupancy_network_forward.1} parent=5 // pred_fallthru
        _
    $region6: #{occupancy_network_forward.1} parent=1 // loop_footer
      %s28 = sadd.s32 1, %s24
    $region7: #{occupancy_network_forward.1} parent=1 // loop_footer_branch
      %23 = sbr.rel target = $region3
    $region8: #{occupancy_network_forward.1} parent=1 // loop_exit
      _
    %1310 = vsyncpa [#allocation5], 1
    %s1311 = scalar_lea.sflag [#allocation5], 1
    %1312 = vsyncpa %s1311, 1

</llo_original>
